<compile_context>
chip_gen: v7x
topology: tpu7x:2x2x1
jax: 0.10.0
libtpu: 0.0.40
codegen_flags: <defaults>
</compile_context>

<pallas_src>
import jax
import jax.numpy as jnp
from jax import lax
from jax.experimental import pallas as pl
from jax.experimental.pallas import tpu as pltpu

EMBEDDING_SIZE = 50
HIDDEN_DIM = 100
HIDDEN_PAD = 128          # per-gate lane-aligned width (4 gates -> 512 lanes)
EMB_PAD = 128             # lane-aligned embedding width for the fused input projection
NUM_WORDS = 2             # ['', 'UNK']

# Kernel gate order: i, f, o (sigmoid, contiguous) then g (tanh).
# PyTorch nn.LSTM stores gates in i, f, g, o order -> permutation below.
_GATE_PERM = (0, 1, 3, 2)


def _lstm_kernel(xflat_ref, wih_ref, whh_ref, bias_ref, len_ref, h_out_ref, xp_ref):
    """Fused input projection + LSTM recurrence with per-row length masking.

    xflat_ref: (T*Bp, Ep)  f32   embedded input, zero-padded, time-major flattened
    wih_ref:   (Ep, 4*Hp)  f32   W_ih^T, gate-reordered & zero-padded
    whh_ref:   (Hp, 4*Hp)  f32   W_hh^T, gate-reordered & zero-padded
    bias_ref:  (1, 4*Hp)   f32   b_ih + b_hh, gate-reordered & zero-padded
    len_ref:   (Bp, 1)     i32   sorted lengths; h/c freeze once t >= len
    h_out_ref: (Bp, Hp)    f32   final hidden state per row (lane-dense)
    xp_ref:    (T*Bp, 4*Hp) f32  VMEM scratch for the hoisted input projection
    """
    TB, G = xp_ref.shape
    Bp, Hp = h_out_ref.shape
    T = TB // Bp

    # ---- Input projection for ALL timesteps: one MXU matmul, off the serial chain.
    xp_ref[...] = (
        jnp.dot(xflat_ref[...], wih_ref[...], preferred_element_type=jnp.float32)
        + bias_ref[...])

    lens = len_ref[...]                                    # (Bp, 1), loop-invariant

    # ---- Serial recurrence: only h @ W_hh^T on the chain; h/c live in vregs.
    h = jnp.zeros((Bp, Hp), jnp.float32)
    c = jnp.zeros((Bp, Hp), jnp.float32)
    for t in range(T):                                     # T static -> fully unrolled
        gates = xp_ref[t * Bp:(t + 1) * Bp, :] + jnp.dot(
            h, whh_ref[...], preferred_element_type=jnp.float32)      # (Bp, 4*Hp)
        sig = jax.nn.sigmoid(gates[:, :3 * Hp])            # i | f | o in one sweep
        g_g = jnp.tanh(gates[:, 3 * Hp:])
        i_g = sig[:, 0 * Hp:1 * Hp]
        f_g = sig[:, 1 * Hp:2 * Hp]
        o_g = sig[:, 2 * Hp:3 * Hp]

        c_new = f_g * c + i_g * g_g
        h_new = o_g * jnp.tanh(c_new)

        keep = t < lens                                    # (Bp, 1), broadcasts over Hp
        h = jnp.where(keep, h_new, h)
        c = jnp.where(keep, c_new, c)

    h_out_ref[...] = h


def _pad_gate_cols(w_t, h, hp):
    """(in_dim, 4*h) in torch gate order -> (in_dim, 4*hp), reordered to i,f,o,g
    with each gate block zero-padded to hp lanes."""
    in_dim = w_t.shape[0]
    w4 = jnp.take(w_t.reshape(in_dim, 4, h), jnp.array(_GATE_PERM), axis=1)
    out = jnp.zeros((in_dim, 4, hp), w_t.dtype).at[:, :, :h].set(w4)
    return out.reshape(in_dim, 4 * hp)


def lstm_last_hidden_pallas(x_tbe, w_ih, w_hh, b_ih, b_hh, lens_sorted):
    """x_tbe: (T, B, E) float32, lens_sorted: (B,) int32. Returns ht[-1]: (B, H)."""
    T, B, E = x_tbe.shape
    H = w_hh.shape[1]
    Hp, Ep = HIDDEN_PAD, EMB_PAD
    Bp = ((B + 7) // 8) * 8                                # pad batch to f32 sublane tile

    # --- Gate-reordered, zero-padded weight / bias layout (padded lanes stay 0). ---
    wih_pad = jnp.zeros((Ep, 4 * Hp), jnp.float32).at[:E, :].set(
        _pad_gate_cols(jnp.asarray(w_ih, jnp.float32).T, H, Hp))       # (Ep, 4*Hp)
    whh_pad = jnp.zeros((Hp, 4 * Hp), jnp.float32).at[:H, :].set(
        _pad_gate_cols(jnp.asarray(w_hh, jnp.float32).T, H, Hp))       # (Hp, 4*Hp)
    bias = _pad_gate_cols(
        (jnp.asarray(b_ih, jnp.float32) + jnp.asarray(b_hh, jnp.float32)).reshape(1, 4 * H),
        H, Hp)                                                          # (1, 4*Hp)

    # --- Zero-padded embedded input, flattened so the kernel does one projection matmul.
    x_pad = jnp.zeros((T, Bp, Ep), jnp.float32).at[:, :B, :E].set(x_tbe.astype(jnp.float32))
    xflat = x_pad.reshape(T * Bp, Ep)

    # Padded rows get length 0 -> their h stays zero and is sliced away below.
    len_col = jnp.zeros((Bp, 1), jnp.int32).at[:B, 0].set(jnp.asarray(lens_sorted, jnp.int32))

    h_pad = pl.pallas_call(
        _lstm_kernel,
        out_shape=jax.ShapeDtypeStruct((Bp, Hp), jnp.float32),
        grid=(1,),
        in_specs=[
            pl.BlockSpec((T * Bp, Ep), lambda i: (0, 0)),
            pl.BlockSpec((Ep, 4 * Hp), lambda i: (0, 0)),
            pl.BlockSpec((Hp, 4 * Hp), lambda i: (0, 0)),
            pl.BlockSpec((1, 4 * Hp), lambda i: (0, 0)),
            pl.BlockSpec((Bp, 1), lambda i: (0, 0)),
        ],
        out_specs=pl.BlockSpec((Bp, Hp), lambda i: (0, 0)),
        scratch_shapes=[pltpu.VMEM((T * Bp, 4 * Hp), jnp.float32)],
        compiler_params=pltpu.CompilerParams(
            dimension_semantics=("arbitrary",)),
    )(xflat, wih_pad, whh_pad, bias, len_col)

    return h_pad[:B, :H]                                                # (B, H)


def questionnaire_forward(x, s, params):
    """x: (B, T) int32 token ids in [0, NUM_WORDS); s: (B,) lengths."""
    B, T = x.shape

    # torch.sort(s, 0, descending=True)
    sort_index = jnp.argsort(-s.astype(jnp.int32))         # (B,)
    s_sorted = s.astype(jnp.int32)[sort_index]             # (B,)

    # Embedding (padding_idx=0 -> row 0 of table is zeros); dropout = identity (eval).
    emb = params["embedding"]                               # (NUM_WORDS, E)
    x_emb = emb[x].astype(jnp.float32)                      # (B, T, E)  tiny XLA gather

    # Note: the original module packs the UNSORTED x with the SORTED lengths.
    x_tbe = jnp.transpose(x_emb, (1, 0, 2))                 # (T, B, E)

    ht = lstm_last_hidden_pallas(
        x_tbe,
        params["w_ih"], params["w_hh"], params["b_ih"], params["b_hh"],
        s_sorted,
    )                                                       # (B, H) == ht[-1]

    # torch.zeros_like(out).scatter_(0, sort_index.expand(-1, H), out)
    out = jnp.zeros_like(ht).at[sort_index].set(ht)
    return out


def _reference_forward(x, s, params):
    """Pure-JAX reference (lax.scan LSTM, unpadded f32) for correctness checking."""
    B, T = x.shape
    H = HIDDEN_DIM
    sort_index = jnp.argsort(-s.astype(jnp.int32))
    s_sorted = s.astype(jnp.int32)[sort_index]
    x_emb = params["embedding"][x].astype(jnp.float32)      # (B, T, E)

    wih_t = params["w_ih"].T
    whh_t = params["w_hh"].T
    bias = params["b_ih"] + params["b_hh"]

    def step(carry, t):
        h, c = carry
        x_t = x_emb[:, t, :]                                 # (B, E)
        gates = x_t @ wih_t + h @ whh_t + bias
        i_g = jax.nn.sigmoid(gates[:, 0:H])
        f_g = jax.nn.sigmoid(gates[:, H:2 * H])
        g_g = jnp.tanh(gates[:, 2 * H:3 * H])
        o_g = jax.nn.sigmoid(gates[:, 3 * H:4 * H])
        c_new = f_g * c + i_g * g_g
        h_new = o_g * jnp.tanh(c_new)
        mask = (t < s_sorted)[:, None]
        h = jnp.where(mask, h_new, h)
        c = jnp.where(mask, c_new, c)
        return (h, c), None

    h0 = jnp.zeros((B, H), jnp.float32)
    c0 = jnp.zeros((B, H), jnp.float32)
    (h_fin, _), _ = lax.scan(step, (h0, c0), jnp.arange(T))
    return jnp.zeros_like(h_fin).at[sort_index].set(h_fin)


def init_params(key):
    kE, k1, k2, k3, k4 = jax.random.split(key, 5)
    H, E = HIDDEN_DIM, EMBEDDING_SIZE
    emb = jax.random.normal(kE, (NUM_WORDS, E), jnp.float32)
    emb = emb.at[0].set(0.0)                                 # padding_idx=0
    bound = 1.0 / jnp.sqrt(jnp.float32(H))
    u = lambda k, shape: jax.random.uniform(k, shape, jnp.float32, -bound, bound)
    return {
        "embedding": emb,
        "w_ih": u(k1, (4 * H, E)),
        "w_hh": u(k2, (4 * H, H)),
        "b_ih": u(k3, (4 * H,)),
        "b_hh": u(k4, (4 * H,)),
    }


if __name__ == "__main__":
    key = jax.random.PRNGKey(0)
    kp, kx = jax.random.split(key)
    params = init_params(kp)

    B, T = 4, 8
    x = jax.random.randint(kx, (B, T), 0, NUM_WORDS, dtype=jnp.int32)   # tokens in {0,1}
    s = jnp.array([5, 8, 3, 6], dtype=jnp.int32)                         # per-row lengths

    out = questionnaire_forward(x, s, params)
    out = jax.block_until_ready(out)

    ref = _reference_forward(x, s, params)
    assert out.shape == (B, HIDDEN_DIM)
    # f32 MXU (Pallas) vs XLA dot may differ at ulp scale; 1e-4 abs is well within signal.
    assert jnp.allclose(out, ref, atol=1e-4, rtol=1e-4), "mismatch vs reference"

    print("KERNEL_OK")
</pallas_src>

<mosaic_0001>
module attributes {stable_mosaic.version = 11 : i64} {
  func.func @_lstm_kernel(%arg0: i32, %arg1: memref<64x128xf32, #tpu.memory_space<vmem>>, %arg2: memref<128x512xf32, #tpu.memory_space<vmem>>, %arg3: memref<128x512xf32, #tpu.memory_space<vmem>>, %arg4: memref<1x512xf32, #tpu.memory_space<vmem>>, %arg5: memref<8x1xi32, #tpu.memory_space<vmem>>, %arg6: memref<8x128xf32, #tpu.memory_space<vmem>>, %arg7: memref<64x512xf32, #tpu.memory_space<vmem>>) attributes {dimension_semantics = [#tpu.dimension_semantics<arbitrary>], iteration_bounds = array<i64: 1>, scalar_prefetch = 0 : i64, scratch_operands = 1 : i64, tpu.core_type = #tpu.core_type<tc>, window_params = [{pipeline_mode = #tpu.pipeline_mode<synchronous>, transform_indices = @transform_0, window_bounds = array<i64: 64, 128>}, {pipeline_mode = #tpu.pipeline_mode<synchronous>, transform_indices = @transform_1, window_bounds = array<i64: 128, 512>}, {pipeline_mode = #tpu.pipeline_mode<synchronous>, transform_indices = @transform_2, window_bounds = array<i64: 128, 512>}, {pipeline_mode = #tpu.pipeline_mode<synchronous>, transform_indices = @transform_3, window_bounds = array<i64: 1, 512>}, {pipeline_mode = #tpu.pipeline_mode<synchronous>, transform_indices = @transform_4, window_bounds = array<i64: 8, 1>}, {pipeline_mode = #tpu.pipeline_mode<synchronous>, transform_indices = @transform_5, window_bounds = array<i64: 8, 128>}]} {
    %c0 = arith.constant 0 : index
    %c0_0 = arith.constant 0 : index
    %0 = vector.load %arg1[%c0, %c0_0] : memref<64x128xf32, #tpu.memory_space<vmem>>, vector<64x128xf32>
    %c0_1 = arith.constant 0 : index
    %c0_2 = arith.constant 0 : index
    %1 = vector.load %arg2[%c0_1, %c0_2] : memref<128x512xf32, #tpu.memory_space<vmem>>, vector<128x512xf32>
    %cst = arith.constant dense<0.000000e+00> : vector<64x512xf32>
    %2 = tpu.matmul %0, %1, %cst {dimension_numbers = #tpu.dot_dimension_numbers<[1], [0], [0], [1], [0, 0, 1, 1], [], []>} : vector<64x128xf32>, vector<128x512xf32>, vector<64x512xf32> -> vector<64x512xf32>
    %c0_3 = arith.constant 0 : index
    %c0_4 = arith.constant 0 : index
    %3 = vector.load %arg4[%c0_3, %c0_4] : memref<1x512xf32, #tpu.memory_space<vmem>>, vector<1x512xf32>
    %4 = vector.broadcast %3 : vector<1x512xf32> to vector<64x512xf32>
    %5 = arith.addf %2, %4 : vector<64x512xf32>
    %c0_5 = arith.constant 0 : index
    %c0_6 = arith.constant 0 : index
    %6 = vector.load %arg7[%c0_5, %c0_6] : memref<64x512xf32, #tpu.memory_space<vmem>>, vector<64x512xf32>
    tpu.vector_store %arg7[%c0_5, %c0_6], %5 {strides = array<i32>} : memref<64x512xf32, #tpu.memory_space<vmem>>, vector<64x512xf32>,
    %c0_7 = arith.constant 0 : index
    %c0_8 = arith.constant 0 : index
    %7 = vector.load %arg5[%c0_7, %c0_8] : memref<8x1xi32, #tpu.memory_space<vmem>>, vector<8x1xi32>
    %cst_9 = arith.constant 0.000000e+00 : f32
    %8 = vector.broadcast %cst_9 : f32 to vector<8x128xf32>
    %cst_10 = arith.constant 0.000000e+00 : f32
    %9 = vector.broadcast %cst_10 : f32 to vector<8x128xf32>
    %c0_11 = arith.constant 0 : index
    %c0_12 = arith.constant 0 : index
    %10 = vector.load %arg7[%c0_11, %c0_12] : memref<64x512xf32, #tpu.memory_space<vmem>>, vector<8x512xf32>
    %c0_13 = arith.constant 0 : index
    %c0_14 = arith.constant 0 : index
    %11 = vector.load %arg3[%c0_13, %c0_14] : memref<128x512xf32, #tpu.memory_space<vmem>>, vector<128x512xf32>
    %cst_15 = arith.constant dense<0.000000e+00> : vector<8x512xf32>
    %12 = tpu.matmul %8, %11, %cst_15 {dimension_numbers = #tpu.dot_dimension_numbers<[1], [0], [0], [1], [0, 0, 1, 1], [], []>} : vector<8x128xf32>, vector<128x512xf32>, vector<8x512xf32> -> vector<8x512xf32>
    %13 = arith.addf %10, %12 : vector<8x512xf32>
    %14 = vector.extract_strided_slice %13 {offsets = [0, 0], sizes = [8, 384], strides = [1, 1]} : vector<8x512xf32> to vector<8x384xf32>
    %15 = arith.negf %14 : vector<8x384xf32>
    %16 = math.exp %15 : vector<8x384xf32>
    %cst_16 = arith.constant 1.000000e+00 : f32
    %17 = vector.broadcast %cst_16 : f32 to vector<8x384xf32>
    %18 = arith.addf %17, %16 : vector<8x384xf32>
    %19 = arith.divf %17, %18 : vector<8x384xf32>
    %20 = vector.extract_strided_slice %13 {offsets = [0, 384], sizes = [8, 128], strides = [1, 1]} : vector<8x512xf32> to vector<8x128xf32>
    %21 = math.tanh %20 : vector<8x128xf32>
    %22 = vector.extract_strided_slice %19 {offsets = [0, 0], sizes = [8, 128], strides = [1, 1]} : vector<8x384xf32> to vector<8x128xf32>
    %23 = vector.extract_strided_slice %19 {offsets = [0, 128], sizes = [8, 128], strides = [1, 1]} : vector<8x384xf32> to vector<8x128xf32>
    %24 = vector.extract_strided_slice %19 {offsets = [0, 256], sizes = [8, 128], strides = [1, 1]} : vector<8x384xf32> to vector<8x128xf32>
    %25 = arith.mulf %23, %9 : vector<8x128xf32>
    %26 = arith.mulf %22, %21 : vector<8x128xf32>
    %27 = arith.addf %25, %26 : vector<8x128xf32>
    %28 = math.tanh %27 : vector<8x128xf32>
    %29 = arith.mulf %24, %28 : vector<8x128xf32>
    %c0_i32 = arith.constant 0 : i32
    %30 = vector.broadcast %c0_i32 : i32 to vector<8x1xi32>
    %31 = arith.cmpi sgt, %7, %30 : vector<8x1xi32>
    %32 = vector.shape_cast %31 : vector<8x1xi1> to vector<8x1xi1>
    %33 = vector.broadcast %32 : vector<8x1xi1> to vector<8x128xi1>
    %34 = arith.select %33, %29, %8 : vector<8x128xi1>, vector<8x128xf32>
    %35 = vector.shape_cast %31 : vector<8x1xi1> to vector<8x1xi1>
    %36 = vector.broadcast %35 : vector<8x1xi1> to vector<8x128xi1>
    %37 = arith.select %36, %27, %9 : vector<8x128xi1>, vector<8x128xf32>
    %c8 = arith.constant 8 : index
    %c0_17 = arith.constant 0 : index
    %38 = vector.load %arg7[%c8, %c0_17] : memref<64x512xf32, #tpu.memory_space<vmem>>, vector<8x512xf32>
    %c0_18 = arith.constant 0 : index
    %c0_19 = arith.constant 0 : index
    %39 = vector.load %arg3[%c0_18, %c0_19] : memref<128x512xf32, #tpu.memory_space<vmem>>, vector<128x512xf32>
    %cst_20 = arith.constant dense<0.000000e+00> : vector<8x512xf32>
    %40 = tpu.matmul %34, %39, %cst_20 {dimension_numbers = #tpu.dot_dimension_numbers<[1], [0], [0], [1], [0, 0, 1, 1], [], []>} : vector<8x128xf32>, vector<128x512xf32>, vector<8x512xf32> -> vector<8x512xf32>
    %41 = arith.addf %38, %40 : vector<8x512xf32>
    %42 = vector.extract_strided_slice %41 {offsets = [0, 0], sizes = [8, 384], strides = [1, 1]} : vector<8x512xf32> to vector<8x384xf32>
    %43 = arith.negf %42 : vector<8x384xf32>
    %44 = math.exp %43 : vector<8x384xf32>
    %cst_21 = arith.constant 1.000000e+00 : f32
    %45 = vector.broadcast %cst_21 : f32 to vector<8x384xf32>
    %46 = arith.addf %45, %44 : vector<8x384xf32>
    %47 = arith.divf %45, %46 : vector<8x384xf32>
    %48 = vector.extract_strided_slice %41 {offsets = [0, 384], sizes = [8, 128], strides = [1, 1]} : vector<8x512xf32> to vector<8x128xf32>
    %49 = math.tanh %48 : vector<8x128xf32>
    %50 = vector.extract_strided_slice %47 {offsets = [0, 0], sizes = [8, 128], strides = [1, 1]} : vector<8x384xf32> to vector<8x128xf32>
    %51 = vector.extract_strided_slice %47 {offsets = [0, 128], sizes = [8, 128], strides = [1, 1]} : vector<8x384xf32> to vector<8x128xf32>
    %52 = vector.extract_strided_slice %47 {offsets = [0, 256], sizes = [8, 128], strides = [1, 1]} : vector<8x384xf32> to vector<8x128xf32>
    %53 = arith.mulf %51, %37 : vector<8x128xf32>
    %54 = arith.mulf %50, %49 : vector<8x128xf32>
    %55 = arith.addf %53, %54 : vector<8x128xf32>
    %56 = math.tanh %55 : vector<8x128xf32>
    %57 = arith.mulf %52, %56 : vector<8x128xf32>
    %c1_i32 = arith.constant 1 : i32
    %58 = vector.broadcast %c1_i32 : i32 to vector<8x1xi32>
    %59 = arith.cmpi sgt, %7, %58 : vector<8x1xi32>
    %60 = vector.shape_cast %59 : vector<8x1xi1> to vector<8x1xi1>
    %61 = vector.broadcast %60 : vector<8x1xi1> to vector<8x128xi1>
    %62 = arith.select %61, %57, %34 : vector<8x128xi1>, vector<8x128xf32>
    %63 = vector.shape_cast %59 : vector<8x1xi1> to vector<8x1xi1>
    %64 = vector.broadcast %63 : vector<8x1xi1> to vector<8x128xi1>
    %65 = arith.select %64, %55, %37 : vector<8x128xi1>, vector<8x128xf32>
    %c16 = arith.constant 16 : index
    %c0_22 = arith.constant 0 : index
    %66 = vector.load %arg7[%c16, %c0_22] : memref<64x512xf32, #tpu.memory_space<vmem>>, vector<8x512xf32>
    %c0_23 = arith.constant 0 : index
    %c0_24 = arith.constant 0 : index
    %67 = vector.load %arg3[%c0_23, %c0_24] : memref<128x512xf32, #tpu.memory_space<vmem>>, vector<128x512xf32>
    %cst_25 = arith.constant dense<0.000000e+00> : vector<8x512xf32>
    %68 = tpu.matmul %62, %67, %cst_25 {dimension_numbers = #tpu.dot_dimension_numbers<[1], [0], [0], [1], [0, 0, 1, 1], [], []>} : vector<8x128xf32>, vector<128x512xf32>, vector<8x512xf32> -> vector<8x512xf32>
    %69 = arith.addf %66, %68 : vector<8x512xf32>
    %70 = vector.extract_strided_slice %69 {offsets = [0, 0], sizes = [8, 384], strides = [1, 1]} : vector<8x512xf32> to vector<8x384xf32>
    %71 = arith.negf %70 : vector<8x384xf32>
    %72 = math.exp %71 : vector<8x384xf32>
    %cst_26 = arith.constant 1.000000e+00 : f32
    %73 = vector.broadcast %cst_26 : f32 to vector<8x384xf32>
    %74 = arith.addf %73, %72 : vector<8x384xf32>
    %75 = arith.divf %73, %74 : vector<8x384xf32>
    %76 = vector.extract_strided_slice %69 {offsets = [0, 384], sizes = [8, 128], strides = [1, 1]} : vector<8x512xf32> to vector<8x128xf32>
    %77 = math.tanh %76 : vector<8x128xf32>
    %78 = vector.extract_strided_slice %75 {offsets = [0, 0], sizes = [8, 128], strides = [1, 1]} : vector<8x384xf32> to vector<8x128xf32>
    %79 = vector.extract_strided_slice %75 {offsets = [0, 128], sizes = [8, 128], strides = [1, 1]} : vector<8x384xf32> to vector<8x128xf32>
    %80 = vector.extract_strided_slice %75 {offsets = [0, 256], sizes = [8, 128], strides = [1, 1]} : vector<8x384xf32> to vector<8x128xf32>
    %81 = arith.mulf %79, %65 : vector<8x128xf32>
    %82 = arith.mulf %78, %77 : vector<8x128xf32>
    %83 = arith.addf %81, %82 : vector<8x128xf32>
    %84 = math.tanh %83 : vector<8x128xf32>
    %85 = arith.mulf %80, %84 : vector<8x128xf32>
    %c2_i32 = arith.constant 2 : i32
    %86 = vector.broadcast %c2_i32 : i32 to vector<8x1xi32>
    %87 = arith.cmpi sgt, %7, %86 : vector<8x1xi32>
    %88 = vector.shape_cast %87 : vector<8x1xi1> to vector<8x1xi1>
    %89 = vector.broadcast %88 : vector<8x1xi1> to vector<8x128xi1>
    %90 = arith.select %89, %85, %62 : vector<8x128xi1>, vector<8x128xf32>
    %91 = vector.shape_cast %87 : vector<8x1xi1> to vector<8x1xi1>
    %92 = vector.broadcast %91 : vector<8x1xi1> to vector<8x128xi1>
    %93 = arith.select %92, %83, %65 : vector<8x128xi1>, vector<8x128xf32>
    %c24 = arith.constant 24 : index
    %c0_27 = arith.constant 0 : index
    %94 = vector.load %arg7[%c24, %c0_27] : memref<64x512xf32, #tpu.memory_space<vmem>>, vector<8x512xf32>
    %c0_28 = arith.constant 0 : index
    %c0_29 = arith.constant 0 : index
    %95 = vector.load %arg3[%c0_28, %c0_29] : memref<128x512xf32, #tpu.memory_space<vmem>>, vector<128x512xf32>
    %cst_30 = arith.constant dense<0.000000e+00> : vector<8x512xf32>
    %96 = tpu.matmul %90, %95, %cst_30 {dimension_numbers = #tpu.dot_dimension_numbers<[1], [0], [0], [1], [0, 0, 1, 1], [], []>} : vector<8x128xf32>, vector<128x512xf32>, vector<8x512xf32> -> vector<8x512xf32>
    %97 = arith.addf %94, %96 : vector<8x512xf32>
    %98 = vector.extract_strided_slice %97 {offsets = [0, 0], sizes = [8, 384], strides = [1, 1]} : vector<8x512xf32> to vector<8x384xf32>
    %99 = arith.negf %98 : vector<8x384xf32>
    %100 = math.exp %99 : vector<8x384xf32>
    %cst_31 = arith.constant 1.000000e+00 : f32
    %101 = vector.broadcast %cst_31 : f32 to vector<8x384xf32>
    %102 = arith.addf %101, %100 : vector<8x384xf32>
    %103 = arith.divf %101, %102 : vector<8x384xf32>
    %104 = vector.extract_strided_slice %97 {offsets = [0, 384], sizes = [8, 128], strides = [1, 1]} : vector<8x512xf32> to vector<8x128xf32>
    %105 = math.tanh %104 : vector<8x128xf32>
    %106 = vector.extract_strided_slice %103 {offsets = [0, 0], sizes = [8, 128], strides = [1, 1]} : vector<8x384xf32> to vector<8x128xf32>
    %107 = vector.extract_strided_slice %103 {offsets = [0, 128], sizes = [8, 128], strides = [1, 1]} : vector<8x384xf32> to vector<8x128xf32>
    %108 = vector.extract_strided_slice %103 {offsets = [0, 256], sizes = [8, 128], strides = [1, 1]} : vector<8x384xf32> to vector<8x128xf32>
    %109 = arith.mulf %107, %93 : vector<8x128xf32>
    %110 = arith.mulf %106, %105 : vector<8x128xf32>
    %111 = arith.addf %109, %110 : vector<8x128xf32>
    %112 = math.tanh %111 : vector<8x128xf32>
    %113 = arith.mulf %108, %112 : vector<8x128xf32>
    %c3_i32 = arith.constant 3 : i32
    %114 = vector.broadcast %c3_i32 : i32 to vector<8x1xi32>
    %115 = arith.cmpi sgt, %7, %114 : vector<8x1xi32>
    %116 = vector.shape_cast %115 : vector<8x1xi1> to vector<8x1xi1>
    %117 = vector.broadcast %116 : vector<8x1xi1> to vector<8x128xi1>
    %118 = arith.select %117, %113, %90 : vector<8x128xi1>, vector<8x128xf32>
    %119 = vector.shape_cast %115 : vector<8x1xi1> to vector<8x1xi1>
    %120 = vector.broadcast %119 : vector<8x1xi1> to vector<8x128xi1>
    %121 = arith.select %120, %111, %93 : vector<8x128xi1>, vector<8x128xf32>
    %c32 = arith.constant 32 : index
    %c0_32 = arith.constant 0 : index
    %122 = vector.load %arg7[%c32, %c0_32] : memref<64x512xf32, #tpu.memory_space<vmem>>, vector<8x512xf32>
    %c0_33 = arith.constant 0 : index
    %c0_34 = arith.constant 0 : index
    %123 = vector.load %arg3[%c0_33, %c0_34] : memref<128x512xf32, #tpu.memory_space<vmem>>, vector<128x512xf32>
    %cst_35 = arith.constant dense<0.000000e+00> : vector<8x512xf32>
    %124 = tpu.matmul %118, %123, %cst_35 {dimension_numbers = #tpu.dot_dimension_numbers<[1], [0], [0], [1], [0, 0, 1, 1], [], []>} : vector<8x128xf32>, vector<128x512xf32>, vector<8x512xf32> -> vector<8x512xf32>
    %125 = arith.addf %122, %124 : vector<8x512xf32>
    %126 = vector.extract_strided_slice %125 {offsets = [0, 0], sizes = [8, 384], strides = [1, 1]} : vector<8x512xf32> to vector<8x384xf32>
    %127 = arith.negf %126 : vector<8x384xf32>
    %128 = math.exp %127 : vector<8x384xf32>
    %cst_36 = arith.constant 1.000000e+00 : f32
    %129 = vector.broadcast %cst_36 : f32 to vector<8x384xf32>
    %130 = arith.addf %129, %128 : vector<8x384xf32>
    %131 = arith.divf %129, %130 : vector<8x384xf32>
    %132 = vector.extract_strided_slice %125 {offsets = [0, 384], sizes = [8, 128], strides = [1, 1]} : vector<8x512xf32> to vector<8x128xf32>
    %133 = math.tanh %132 : vector<8x128xf32>
    %134 = vector.extract_strided_slice %131 {offsets = [0, 0], sizes = [8, 128], strides = [1, 1]} : vector<8x384xf32> to vector<8x128xf32>
    %135 = vector.extract_strided_slice %131 {offsets = [0, 128], sizes = [8, 128], strides = [1, 1]} : vector<8x384xf32> to vector<8x128xf32>
    %136 = vector.extract_strided_slice %131 {offsets = [0, 256], sizes = [8, 128], strides = [1, 1]} : vector<8x384xf32> to vector<8x128xf32>
    %137 = arith.mulf %135, %121 : vector<8x128xf32>
    %138 = arith.mulf %134, %133 : vector<8x128xf32>
    %139 = arith.addf %137, %138 : vector<8x128xf32>
    %140 = math.tanh %139 : vector<8x128xf32>
    %141 = arith.mulf %136, %140 : vector<8x128xf32>
    %c4_i32 = arith.constant 4 : i32
    %142 = vector.broadcast %c4_i32 : i32 to vector<8x1xi32>
    %143 = arith.cmpi sgt, %7, %142 : vector<8x1xi32>
    %144 = vector.shape_cast %143 : vector<8x1xi1> to vector<8x1xi1>
    %145 = vector.broadcast %144 : vector<8x1xi1> to vector<8x128xi1>
    %146 = arith.select %145, %141, %118 : vector<8x128xi1>, vector<8x128xf32>
    %147 = vector.shape_cast %143 : vector<8x1xi1> to vector<8x1xi1>
    %148 = vector.broadcast %147 : vector<8x1xi1> to vector<8x128xi1>
    %149 = arith.select %148, %139, %121 : vector<8x128xi1>, vector<8x128xf32>
    %c40 = arith.constant 40 : index
    %c0_37 = arith.constant 0 : index
    %150 = vector.load %arg7[%c40, %c0_37] : memref<64x512xf32, #tpu.memory_space<vmem>>, vector<8x512xf32>
    %c0_38 = arith.constant 0 : index
    %c0_39 = arith.constant 0 : index
    %151 = vector.load %arg3[%c0_38, %c0_39] : memref<128x512xf32, #tpu.memory_space<vmem>>, vector<128x512xf32>
    %cst_40 = arith.constant dense<0.000000e+00> : vector<8x512xf32>
    %152 = tpu.matmul %146, %151, %cst_40 {dimension_numbers = #tpu.dot_dimension_numbers<[1], [0], [0], [1], [0, 0, 1, 1], [], []>} : vector<8x128xf32>, vector<128x512xf32>, vector<8x512xf32> -> vector<8x512xf32>
    %153 = arith.addf %150, %152 : vector<8x512xf32>
    %154 = vector.extract_strided_slice %153 {offsets = [0, 0], sizes = [8, 384], strides = [1, 1]} : vector<8x512xf32> to vector<8x384xf32>
    %155 = arith.negf %154 : vector<8x384xf32>
    %156 = math.exp %155 : vector<8x384xf32>
    %cst_41 = arith.constant 1.000000e+00 : f32
    %157 = vector.broadcast %cst_41 : f32 to vector<8x384xf32>
    %158 = arith.addf %157, %156 : vector<8x384xf32>
    %159 = arith.divf %157, %158 : vector<8x384xf32>
    %160 = vector.extract_strided_slice %153 {offsets = [0, 384], sizes = [8, 128], strides = [1, 1]} : vector<8x512xf32> to vector<8x128xf32>
    %161 = math.tanh %160 : vector<8x128xf32>
    %162 = vector.extract_strided_slice %159 {offsets = [0, 0], sizes = [8, 128], strides = [1, 1]} : vector<8x384xf32> to vector<8x128xf32>
    %163 = vector.extract_strided_slice %159 {offsets = [0, 128], sizes = [8, 128], strides = [1, 1]} : vector<8x384xf32> to vector<8x128xf32>
    %164 = vector.extract_strided_slice %159 {offsets = [0, 256], sizes = [8, 128], strides = [1, 1]} : vector<8x384xf32> to vector<8x128xf32>
    %165 = arith.mulf %163, %149 : vector<8x128xf32>
    %166 = arith.mulf %162, %161 : vector<8x128xf32>
    %167 = arith.addf %165, %166 : vector<8x128xf32>
    %168 = math.tanh %167 : vector<8x128xf32>
    %169 = arith.mulf %164, %168 : vector<8x128xf32>
    %c5_i32 = arith.constant 5 : i32
    %170 = vector.broadcast %c5_i32 : i32 to vector<8x1xi32>
    %171 = arith.cmpi sgt, %7, %170 : vector<8x1xi32>
    %172 = vector.shape_cast %171 : vector<8x1xi1> to vector<8x1xi1>
    %173 = vector.broadcast %172 : vector<8x1xi1> to vector<8x128xi1>
    %174 = arith.select %173, %169, %146 : vector<8x128xi1>, vector<8x128xf32>
    %175 = vector.shape_cast %171 : vector<8x1xi1> to vector<8x1xi1>
    %176 = vector.broadcast %175 : vector<8x1xi1> to vector<8x128xi1>
    %177 = arith.select %176, %167, %149 : vector<8x128xi1>, vector<8x128xf32>
    %c48 = arith.constant 48 : index
    %c0_42 = arith.constant 0 : index
    %178 = vector.load %arg7[%c48, %c0_42] : memref<64x512xf32, #tpu.memory_space<vmem>>, vector<8x512xf32>
    %c0_43 = arith.constant 0 : index
    %c0_44 = arith.constant 0 : index
    %179 = vector.load %arg3[%c0_43, %c0_44] : memref<128x512xf32, #tpu.memory_space<vmem>>, vector<128x512xf32>
    %cst_45 = arith.constant dense<0.000000e+00> : vector<8x512xf32>
    %180 = tpu.matmul %174, %179, %cst_45 {dimension_numbers = #tpu.dot_dimension_numbers<[1], [0], [0], [1], [0, 0, 1, 1], [], []>} : vector<8x128xf32>, vector<128x512xf32>, vector<8x512xf32> -> vector<8x512xf32>
    %181 = arith.addf %178, %180 : vector<8x512xf32>
    %182 = vector.extract_strided_slice %181 {offsets = [0, 0], sizes = [8, 384], strides = [1, 1]} : vector<8x512xf32> to vector<8x384xf32>
    %183 = arith.negf %182 : vector<8x384xf32>
    %184 = math.exp %183 : vector<8x384xf32>
    %cst_46 = arith.constant 1.000000e+00 : f32
    %185 = vector.broadcast %cst_46 : f32 to vector<8x384xf32>
    %186 = arith.addf %185, %184 : vector<8x384xf32>
    %187 = arith.divf %185, %186 : vector<8x384xf32>
    %188 = vector.extract_strided_slice %181 {offsets = [0, 384], sizes = [8, 128], strides = [1, 1]} : vector<8x512xf32> to vector<8x128xf32>
    %189 = math.tanh %188 : vector<8x128xf32>
    %190 = vector.extract_strided_slice %187 {offsets = [0, 0], sizes = [8, 128], strides = [1, 1]} : vector<8x384xf32> to vector<8x128xf32>
    %191 = vector.extract_strided_slice %187 {offsets = [0, 128], sizes = [8, 128], strides = [1, 1]} : vector<8x384xf32> to vector<8x128xf32>
    %192 = vector.extract_strided_slice %187 {offsets = [0, 256], sizes = [8, 128], strides = [1, 1]} : vector<8x384xf32> to vector<8x128xf32>
    %193 = arith.mulf %191, %177 : vector<8x128xf32>
    %194 = arith.mulf %190, %189 : vector<8x128xf32>
    %195 = arith.addf %193, %194 : vector<8x128xf32>
    %196 = math.tanh %195 : vector<8x128xf32>
    %197 = arith.mulf %192, %196 : vector<8x128xf32>
    %c6_i32 = arith.constant 6 : i32
    %198 = vector.broadcast %c6_i32 : i32 to vector<8x1xi32>
    %199 = arith.cmpi sgt, %7, %198 : vector<8x1xi32>
    %200 = vector.shape_cast %199 : vector<8x1xi1> to vector<8x1xi1>
    %201 = vector.broadcast %200 : vector<8x1xi1> to vector<8x128xi1>
    %202 = arith.select %201, %197, %174 : vector<8x128xi1>, vector<8x128xf32>
    %203 = vector.shape_cast %199 : vector<8x1xi1> to vector<8x1xi1>
    %204 = vector.broadcast %203 : vector<8x1xi1> to vector<8x128xi1>
    %205 = arith.select %204, %195, %177 : vector<8x128xi1>, vector<8x128xf32>
    %c56 = arith.constant 56 : index
    %c0_47 = arith.constant 0 : index
    %206 = vector.load %arg7[%c56, %c0_47] : memref<64x512xf32, #tpu.memory_space<vmem>>, vector<8x512xf32>
    %c0_48 = arith.constant 0 : index
    %c0_49 = arith.constant 0 : index
    %207 = vector.load %arg3[%c0_48, %c0_49] : memref<128x512xf32, #tpu.memory_space<vmem>>, vector<128x512xf32>
    %cst_50 = arith.constant dense<0.000000e+00> : vector<8x512xf32>
    %208 = tpu.matmul %202, %207, %cst_50 {dimension_numbers = #tpu.dot_dimension_numbers<[1], [0], [0], [1], [0, 0, 1, 1], [], []>} : vector<8x128xf32>, vector<128x512xf32>, vector<8x512xf32> -> vector<8x512xf32>
    %209 = arith.addf %206, %208 : vector<8x512xf32>
    %210 = vector.extract_strided_slice %209 {offsets = [0, 0], sizes = [8, 384], strides = [1, 1]} : vector<8x512xf32> to vector<8x384xf32>
    %211 = arith.negf %210 : vector<8x384xf32>
    %212 = math.exp %211 : vector<8x384xf32>
    %cst_51 = arith.constant 1.000000e+00 : f32
    %213 = vector.broadcast %cst_51 : f32 to vector<8x384xf32>
    %214 = arith.addf %213, %212 : vector<8x384xf32>
    %215 = arith.divf %213, %214 : vector<8x384xf32>
    %216 = vector.extract_strided_slice %209 {offsets = [0, 384], sizes = [8, 128], strides = [1, 1]} : vector<8x512xf32> to vector<8x128xf32>
    %217 = math.tanh %216 : vector<8x128xf32>
    %218 = vector.extract_strided_slice %215 {offsets = [0, 0], sizes = [8, 128], strides = [1, 1]} : vector<8x384xf32> to vector<8x128xf32>
    %219 = vector.extract_strided_slice %215 {offsets = [0, 128], sizes = [8, 128], strides = [1, 1]} : vector<8x384xf32> to vector<8x128xf32>
    %220 = vector.extract_strided_slice %215 {offsets = [0, 256], sizes = [8, 128], strides = [1, 1]} : vector<8x384xf32> to vector<8x128xf32>
    %221 = arith.mulf %219, %205 : vector<8x128xf32>
    %222 = arith.mulf %218, %217 : vector<8x128xf32>
    %223 = arith.addf %221, %222 : vector<8x128xf32>
    %224 = math.tanh %223 : vector<8x128xf32>
    %225 = arith.mulf %220, %224 : vector<8x128xf32>
    %c7_i32 = arith.constant 7 : i32
    %226 = vector.broadcast %c7_i32 : i32 to vector<8x1xi32>
    %227 = arith.cmpi sgt, %7, %226 : vector<8x1xi32>
    %228 = vector.shape_cast %227 : vector<8x1xi1> to vector<8x1xi1>
    %229 = vector.broadcast %228 : vector<8x1xi1> to vector<8x128xi1>
    %230 = arith.select %229, %225, %202 : vector<8x128xi1>, vector<8x128xf32>
    %c0_52 = arith.constant 0 : index
    %c0_53 = arith.constant 0 : index
    %231 = vector.load %arg6[%c0_52, %c0_53] : memref<8x128xf32, #tpu.memory_space<vmem>>, vector<8x128xf32>
    tpu.vector_store %arg6[%c0_52, %c0_53], %230 {strides = array<i32>} : memref<8x128xf32, #tpu.memory_space<vmem>>, vector<8x128xf32>,
    return
  }
  func.func @transform_0(%arg0: i32) -> (i32, i32) {
    %c0_i32 = arith.constant 0 : i32
    %c0_i32_0 = arith.constant 0 : i32
    %c0_i32_1 = arith.constant 0 : i32
    return %c0_i32, %c0_i32_0 : i32, i32
  }
  func.func @transform_1(%arg0: i32) -> (i32, i32) {
    %c0_i32 = arith.constant 0 : i32
    %c0_i32_0 = arith.constant 0 : i32
    %c0_i32_1 = arith.constant 0 : i32
    return %c0_i32, %c0_i32_0 : i32, i32
  }
  func.func @transform_2(%arg0: i32) -> (i32, i32) {
    %c0_i32 = arith.constant 0 : i32
    %c0_i32_0 = arith.constant 0 : i32
    %c0_i32_1 = arith.constant 0 : i32
    return %c0_i32, %c0_i32_0 : i32, i32
  }
  func.func @transform_3(%arg0: i32) -> (i32, i32) {
    %c0_i32 = arith.constant 0 : i32
    %c0_i32_0 = arith.constant 0 : i32
    %c0_i32_1 = arith.constant 0 : i32
    return %c0_i32, %c0_i32_0 : i32, i32
  }
  func.func @transform_4(%arg0: i32) -> (i32, i32) {
    %c0_i32 = arith.constant 0 : i32
    %c0_i32_0 = arith.constant 0 : i32
    %c0_i32_1 = arith.constant 0 : i32
    return %c0_i32, %c0_i32_0 : i32, i32
  }
  func.func @transform_5(%arg0: i32) -> (i32, i32) {
    %c0_i32 = arith.constant 0 : i32
    %c0_i32_0 = arith.constant 0 : i32
    %c0_i32_1 = arith.constant 0 : i32
    return %c0_i32, %c0_i32_0 : i32, i32
  }
}

</mosaic_0001>

<llo_original>
// kernel: tpu_custom_call.1
$region0: #{tpu_custom_call.1}
  #allocation0 [shape = 'u32[]', space=smem, size = 0x4, offset = 0x4, fixed_abs, tag = 'smem constant byte address 0x4 - core index']
  #allocation1 [shape = 'u32[144,128]{1,0:T(1,128)}', space=vmem, size = 0x12000, scoped, tag = 'internal scratch']
  #allocation2 [shape = 'f32[64,512]{1,0:T(8,128)}', space=vmem, size = 0x20000, scoped, tag = 'scratch operand']
  %s0 = inlined_call_operand.hbm [shape: f32[64,128], index: 0, kind: input, shape index: {}]
  %s1 = inlined_call_operand.hbm [shape: f32[128,512], index: 1, kind: input, shape index: {}]
  %s2 = inlined_call_operand.hbm [shape: f32[128,512], index: 2, kind: input, shape index: {}]
  %s3 = inlined_call_operand.vmem [shape: f32[1,512], index: 3, kind: input, shape index: {}]
  %s4 = inlined_call_operand.vmem [shape: s32[8,1], index: 4, kind: input, shape index: {}]
  %s5 = inlined_call_operand.hbm [shape: f32[8,128], index: 5, kind: output, shape index: {}]
  %s6 = sld [smem:[#allocation0]]
  $region42: #{tpu_custom_call.1} parent=0
    _
  %s8 = ssub.s32 1, %s6
  %s9 = scalar_select 0, %s8, %s6
  $region1: #{tpu_custom_call.1} parent=0
    #allocation3 [shape = 'u8[32768]{0}', space=vmem, size = 0x8000, scoped, tag = 'input window, operand 0, single buffered']
    #allocation4 [shape = 's32[1]{0}', space=sflag, size = 0x4, scoped, tag = 'scoped memory for tpu_custom_call.1']
    #allocation5 [shape = 's32[1]{0}', space=sflag, size = 0x4, scoped, tag = 'scoped memory for tpu_custom_call.1']
    #allocation6 [shape = 'u8[262144]{0}', space=vmem, size = 0x40000, scoped, tag = 'input window, operand 1, single buffered']
    #allocation7 [shape = 's32[1]{0}', space=sflag, size = 0x4, scoped, tag = 'scoped memory for tpu_custom_call.1']
    #allocation8 [shape = 'u8[262144]{0}', space=vmem, size = 0x40000, scoped, tag = 'input window, operand 2, single buffered']
    #allocation9 [shape = 'u8[4096]{0}', space=vmem, size = 0x1000, scoped, tag = 'output window, operand 0, single buffered']
    %10 = vsyncpa [#allocation4], 0
    %11 = vsyncpa [#allocation7], 0
    %12 = vsyncpa [#allocation5], 0
    // Predicated region
    $region2: #{tpu_custom_call.1} parent=1 // pred_check
      _
    $region3: #{tpu_custom_call.1} parent=1 // pred_check_branch
      %14 = sbr.rel (0) target = $region5
    $region4: #{tpu_custom_call.1} parent=1 // pred_region
      %s16 = ssub.s32 1024, 1024
      %17 = vsyncadd [#allocation4], %s16
      %s18 = sshll.u32 [#allocation3], 4
      %s19 = int_to_ptr.vmem [resolvable:$true] %s18
      %24 = dma.hbm_to_vmem [thread:$0]  %s0, 1024, %s19, [#allocation4], 128, 128, 8
    $region5: #{tpu_custom_call.1} parent=1 // pred_fallthru
      _
    // Predicated region
    $region6: #{tpu_custom_call.1} parent=1 // pred_check
      _
    $region7: #{tpu_custom_call.1} parent=1 // pred_check_branch
      %26 = sbr.rel (0) target = $region9
    $region8: #{tpu_custom_call.1} parent=1 // pred_region
      %s28 = ssub.s32 8192, 8192
      %29 = vsyncadd [#allocation7], %s28
      %s30 = sshll.u32 [#allocation6], 4
      %s31 = int_to_ptr.vmem [resolvable:$true] %s30
      %36 = dma.hbm_to_vmem [thread:$0]  %s1, 8192, %s31, [#allocation7], 512, 512, 32
    $region9: #{tpu_custom_call.1} parent=1 // pred_fallthru
      _
    // Predicated region
    $region10: #{tpu_custom_call.1} parent=1 // pred_check
      _
    $region11: #{tpu_custom_call.1} parent=1 // pred_check_branch
      %38 = sbr.rel (0) target = $region13
    $region12: #{tpu_custom_call.1} parent=1 // pred_region
      %s40 = ssub.s32 8192, 8192
      %41 = vsyncadd [#allocation7], %s40
      %s42 = sshll.u32 [#allocation8], 4
      %s43 = int_to_ptr.vmem [resolvable:$true] %s42
      %48 = dma.hbm_to_vmem [thread:$0]  %s2, 8192, %s43, [#allocation7], 512, 512, 32
    $region13: #{tpu_custom_call.1} parent=1 // pred_fallthru
      _
    // Predicated region
    $region14: #{tpu_custom_call.1} parent=1 // pred_check
      _
    $region15: #{tpu_custom_call.1} parent=1 // pred_check_branch
      %50 = sbr.rel (0) target = $region17
    $region16: #{tpu_custom_call.1} parent=1 // pred_region
      _
    $region17: #{tpu_custom_call.1} parent=1 // pred_fallthru
      _
    // Predicated region
    $region18: #{tpu_custom_call.1} parent=1 // pred_check
      _
    $region19: #{tpu_custom_call.1} parent=1 // pred_check_branch
      %52 = sbr.rel (0) target = $region21
    $region20: #{tpu_custom_call.1} parent=1 // pred_region
      _
    $region21: #{tpu_custom_call.1} parent=1 // pred_fallthru
      _
    // Predicated region
    $region22: #{tpu_custom_call.1} parent=1 // pred_check
      _
    $region23: #{tpu_custom_call.1} parent=1 // pred_check_branch
      %54 = sbr.rel (0) target = $region25
    $region24: #{tpu_custom_call.1} parent=1 // pred_region
      %55 = dma.done [#allocation4], 1024
    $region25: #{tpu_custom_call.1} parent=1 // pred_fallthru
      _
    // Predicated region
    $region26: #{tpu_custom_call.1} parent=1 // pred_check
      _
    $region27: #{tpu_custom_call.1} parent=1 // pred_check_branch
      %57 = sbr.rel (0) target = $region29
    $region28: #{tpu_custom_call.1} parent=1 // pred_region
      %58 = dma.done [#allocation7], 8192
    $region29: #{tpu_custom_call.1} parent=1 // pred_fallthru
      _
    // Predicated region
    $region30: #{tpu_custom_call.1} parent=1 // pred_check
      _
    $region31: #{tpu_custom_call.1} parent=1 // pred_check_branch
      %60 = sbr.rel (0) target = $region33
    $region32: #{tpu_custom_call.1} parent=1 // pred_region
      %61 = dma.done [#allocation7], 8192
    $region33: #{tpu_custom_call.1} parent=1 // pred_fallthru
      _
    %v62 = vld [vmem:[#allocation3] sm:$0xff]
    %v63 = vld [vmem:[#allocation3 + $0x8] sm:$0xff]
    %v64 = vld [vmem:[#allocation3 + $0x10] sm:$0xff]
    %v65 = vld [vmem:[#allocation3 + $0x18] sm:$0xff]
    %v66 = vld [vmem:[#allocation3 + $0x20] sm:$0xff]
    %v67 = vld [vmem:[#allocation3 + $0x28] sm:$0xff]
    %v68 = vld [vmem:[#allocation3 + $0x30] sm:$0xff]
    %v69 = vld [vmem:[#allocation3 + $0x38] sm:$0xff]
    %v70 = vld [vmem:[#allocation6] sm:$0xff]
    %v71 = vld [vmem:[#allocation6 + $0x8] sm:$0xff]
    %v72 = vld [vmem:[#allocation6 + $0x10] sm:$0xff]
    %v73 = vld [vmem:[#allocation6 + $0x18] sm:$0xff]
    %v74 = vld [vmem:[#allocation6 + $0x20] sm:$0xff]
    %v75 = vld [vmem:[#allocation6 + $0x28] sm:$0xff]
    %v76 = vld [vmem:[#allocation6 + $0x30] sm:$0xff]
    %v77 = vld [vmem:[#allocation6 + $0x38] sm:$0xff]
    %v78 = vld [vmem:[#allocation6 + $0x40] sm:$0xff]
    %v79 = vld [vmem:[#allocation6 + $0x48] sm:$0xff]
    %v80 = vld [vmem:[#allocation6 + $0x50] sm:$0xff]
    %v81 = vld [vmem:[#allocation6 + $0x58] sm:$0xff]
    %v82 = vld [vmem:[#allocation6 + $0x60] sm:$0xff]
    %v83 = vld [vmem:[#allocation6 + $0x68] sm:$0xff]
    %v84 = vld [vmem:[#allocation6 + $0x70] sm:$0xff]
    %v85 = vld [vmem:[#allocation6 + $0x78] sm:$0xff]
    %v86 = vld [vmem:[#allocation6 + $0x80] sm:$0xff]
    %v87 = vld [vmem:[#allocation6 + $0x88] sm:$0xff]
    %v88 = vld [vmem:[#allocation6 + $0x90] sm:$0xff]
    %v89 = vld [vmem:[#allocation6 + $0x98] sm:$0xff]
    %v90 = vld [vmem:[#allocation6 + $0xa0] sm:$0xff]
    %v91 = vld [vmem:[#allocation6 + $0xa8] sm:$0xff]
    %v92 = vld [vmem:[#allocation6 + $0xb0] sm:$0xff]
    %v93 = vld [vmem:[#allocation6 + $0xb8] sm:$0xff]
    %v94 = vld [vmem:[#allocation6 + $0xc0] sm:$0xff]
    %v95 = vld [vmem:[#allocation6 + $0xc8] sm:$0xff]
    %v96 = vld [vmem:[#allocation6 + $0xd0] sm:$0xff]
    %v97 = vld [vmem:[#allocation6 + $0xd8] sm:$0xff]
    %v98 = vld [vmem:[#allocation6 + $0xe0] sm:$0xff]
    %v99 = vld [vmem:[#allocation6 + $0xe8] sm:$0xff]
    %v100 = vld [vmem:[#allocation6 + $0xf0] sm:$0xff]
    %v101 = vld [vmem:[#allocation6 + $0xf8] sm:$0xff]
    %v102 = vld [vmem:[#allocation6 + $0x100] sm:$0xff]
    %v103 = vld [vmem:[#allocation6 + $0x108] sm:$0xff]
    %v104 = vld [vmem:[#allocation6 + $0x110] sm:$0xff]
    %v105 = vld [vmem:[#allocation6 + $0x118] sm:$0xff]
    %v106 = vld [vmem:[#allocation6 + $0x120] sm:$0xff]
    %v107 = vld [vmem:[#allocation6 + $0x128] sm:$0xff]
    %v108 = vld [vmem:[#allocation6 + $0x130] sm:$0xff]
    %v109 = vld [vmem:[#allocation6 + $0x138] sm:$0xff]
    %v110 = vld [vmem:[#allocation6 + $0x140] sm:$0xff]
    %v111 = vld [vmem:[#allocation6 + $0x148] sm:$0xff]
    %v112 = vld [vmem:[#allocation6 + $0x150] sm:$0xff]
    %v113 = vld [vmem:[#allocation6 + $0x158] sm:$0xff]
    %v114 = vld [vmem:[#allocation6 + $0x160] sm:$0xff]
    %v115 = vld [vmem:[#allocation6 + $0x168] sm:$0xff]
    %v116 = vld [vmem:[#allocation6 + $0x170] sm:$0xff]
    %v117 = vld [vmem:[#allocation6 + $0x178] sm:$0xff]
    %v118 = vld [vmem:[#allocation6 + $0x180] sm:$0xff]
    %v119 = vld [vmem:[#allocation6 + $0x188] sm:$0xff]
    %v120 = vld [vmem:[#allocation6 + $0x190] sm:$0xff]
    %v121 = vld [vmem:[#allocation6 + $0x198] sm:$0xff]
    %v122 = vld [vmem:[#allocation6 + $0x1a0] sm:$0xff]
    %v123 = vld [vmem:[#allocation6 + $0x1a8] sm:$0xff]
    %v124 = vld [vmem:[#allocation6 + $0x1b0] sm:$0xff]
    %v125 = vld [vmem:[#allocation6 + $0x1b8] sm:$0xff]
    %v126 = vld [vmem:[#allocation6 + $0x1c0] sm:$0xff]
    %v127 = vld [vmem:[#allocation6 + $0x1c8] sm:$0xff]
    %v128 = vld [vmem:[#allocation6 + $0x1d0] sm:$0xff]
    %v129 = vld [vmem:[#allocation6 + $0x1d8] sm:$0xff]
    %v130 = vld [vmem:[#allocation6 + $0x1e0] sm:$0xff]
    %v131 = vld [vmem:[#allocation6 + $0x1e8] sm:$0xff]
    %v132 = vld [vmem:[#allocation6 + $0x1f0] sm:$0xff]
    %v133 = vld [vmem:[#allocation6 + $0x1f8] sm:$0xff]
    %v134 = vld [vmem:[%s3] sm:$0xf]
    %v136 = vlaneseq
    %v137 = vshrl.u32 %v136, 7
    %v138 = vsub.s32 0, %v137
    %v139 = vrot.slane %v134, %v138
    %v140 = vlaneseq
    %v141 = vshrl.u32 %v140, 7
    %v142 = vsub.s32 1, %v141
    %v143 = vrot.slane %v134, %v142
    %v144 = vlaneseq
    %v145 = vshrl.u32 %v144, 7
    %v146 = vsub.s32 2, %v145
    %v147 = vrot.slane %v134, %v146
    %v148 = vlaneseq
    %v149 = vshrl.u32 %v148, 7
    %v150 = vsub.s32 3, %v149
    %v151 = vrot.slane %v134, %v150
    %156 = vmatprep.subr.mxu0 %v71
    %157 = vmatpush1.msra.mxu0 %v70
    %158 = vmatprep.subr.mxu0 %v75
    %159 = vmatpush1.msra.mxu0 %v74
    %160 = vmatprep.subr.mxu0 %v79
    %161 = vmatpush1.msra.mxu0 %v78
    %162 = vmatprep.subr.mxu0 %v83
    %163 = vmatpush1.msra.mxu0 %v82
    %164 = vmatprep.subr.mxu0 %v87
    %165 = vmatpush1.msra.mxu0 %v86
    %166 = vmatprep.subr.mxu0 %v91
    %167 = vmatpush1.msra.mxu0 %v90
    %168 = vmatprep.subr.mxu0 %v95
    %169 = vmatpush1.msra.mxu0 %v94
    %170 = vmatprep.subr.mxu0 %v99
    %171 = vmatpush1.msra.mxu0 %v98
    %172 = vmatprep.subr.mxu0 %v103
    %173 = vmatpush1.msra.mxu0 %v102
    %174 = vmatprep.subr.mxu0 %v107
    %175 = vmatpush1.msra.mxu0 %v106
    %176 = vmatprep.subr.mxu0 %v111
    %177 = vmatpush1.msra.mxu0 %v110
    %178 = vmatprep.subr.mxu0 %v115
    %179 = vmatpush1.msra.mxu0 %v114
    %180 = vmatprep.subr.mxu0 %v119
    %181 = vmatpush1.msra.mxu0 %v118
    %182 = vmatprep.subr.mxu0 %v123
    %183 = vmatpush1.msra.mxu0 %v122
    %184 = vmatprep.subr.mxu0 %v127
    %185 = vmatpush1.msra.mxu0 %v126
    %186 = vmatprep.subr.mxu0 %v131
    %187 = vmatpush1.msra.mxu0 %v130
    %188 = vmatprep.subr.mxu0 0.0
    %189 = vmatpush1.msra.mxu0 0.0
    %190 = vmatprep.subr.mxu0 0.0
    %191 = vmatpush1.msra.mxu0 0.0
    %192 = vmatprep.subr.mxu0 0.0
    %193 = vmatpush1.msra.mxu0 0.0
    %194 = vmatprep.subr.mxu0 0.0
    %195 = vmatpush1.msra.mxu0 0.0
    %196 = vmatprep.subr.mxu0 0.0
    %197 = vmatpush1.msra.mxu0 0.0
    %198 = vmatprep.subr.mxu0 0.0
    %199 = vmatpush1.msra.mxu0 0.0
    %200 = vmatprep.subr.mxu0 0.0
    %201 = vmatpush1.msra.mxu0 0.0
    %202 = vmatprep.subr.mxu0 0.0
    %203 = vmatpush1.msra.mxu0 0.0
    %204 = vmatprep.subr.mxu0 0.0
    %205 = vmatpush1.msra.mxu0 0.0
    %206 = vmatprep.subr.mxu0 0.0
    %207 = vmatpush1.msra.mxu0 0.0
    %208 = vmatprep.subr.mxu0 0.0
    %209 = vmatpush1.msra.mxu0 0.0
    %210 = vmatprep.subr.mxu0 0.0
    %211 = vmatpush1.msra.mxu0 0.0
    %212 = vmatprep.subr.mxu0 0.0
    %213 = vmatpush1.msra.mxu0 0.0
    %214 = vmatprep.subr.mxu0 0.0
    %215 = vmatpush1.msra.mxu0 0.0
    %216 = vmatprep.subr.mxu0 0.0
    %217 = vmatpush1.msra.mxu0 0.0
    %218 = vmatprep.subr.mxu0 0.0
    %219 = vmatpush1.msra.mxu0 0.0
    %220 = vmatprep.mubr.f32.mxu0 0.0
    %221 = vmatmul.mubr.f32.gmra.mrb[0].mxu0 %v62
    %v222 = vpop.f32.mrb[0].mxu0
    %v223 = vadd.f32 %v139, %v222
    %v224 = vpop.f32.mrb[0].mxu0
    %v225 = vadd.f32 %v143, %v224
    %226 = vmatprep.mubr.f32.mxu0 0.0
    %227 = vmatmul.mubr.f32.gmra.mrb[0].mxu0 %v63
    %v228 = vpop.f32.mrb[0].mxu0
    %v229 = vadd.f32 %v139, %v228
    %v230 = vpop.f32.mrb[0].mxu0
    %v231 = vadd.f32 %v143, %v230
    %232 = vmatprep.mubr.f32.mxu0 0.0
    %233 = vmatmul.mubr.f32.gmra.mrb[0].mxu0 %v64
    %v234 = vpop.f32.mrb[0].mxu0
    %v235 = vadd.f32 %v139, %v234
    %v236 = vpop.f32.mrb[0].mxu0
    %v237 = vadd.f32 %v143, %v236
    %238 = vmatprep.mubr.f32.mxu0 0.0
    %239 = vmatmul.mubr.f32.gmra.mrb[0].mxu0 %v65
    %v240 = vpop.f32.mrb[0].mxu0
    %v241 = vadd.f32 %v139, %v240
    %v242 = vpop.f32.mrb[0].mxu0
    %v243 = vadd.f32 %v143, %v242
    %244 = vmatprep.mubr.f32.mxu0 0.0
    %245 = vmatmul.mubr.f32.gmra.mrb[0].mxu0 %v66
    %v246 = vpop.f32.mrb[0].mxu0
    %v247 = vadd.f32 %v139, %v246
    %v248 = vpop.f32.mrb[0].mxu0
    %v249 = vadd.f32 %v143, %v248
    %250 = vmatprep.mubr.f32.mxu0 0.0
    %251 = vmatmul.mubr.f32.gmra.mrb[0].mxu0 %v67
    %v252 = vpop.f32.mrb[0].mxu0
    %v253 = vadd.f32 %v139, %v252
    %v254 = vpop.f32.mrb[0].mxu0
    %v255 = vadd.f32 %v143, %v254
    %256 = vmatprep.mubr.f32.mxu0 0.0
    %257 = vmatmul.mubr.f32.gmra.mrb[0].mxu0 %v68
    %v258 = vpop.f32.mrb[0].mxu0
    %v259 = vadd.f32 %v139, %v258
    %v260 = vpop.f32.mrb[0].mxu0
    %v261 = vadd.f32 %v143, %v260
    %262 = vmatprep.mubr.f32.mxu0 0.0
    %263 = vmatmul.mubr.f32.gmra.mrb[0].mxu0 %v69
    %v264 = vpop.f32.mrb[0].mxu0
    %v265 = vadd.f32 %v139, %v264
    %v266 = vpop.f32.mrb[0].mxu0
    %v267 = vadd.f32 %v143, %v266
    %268 = vdwg.mxu0
    %269 = vmatprep.subr.mxu0 %v73
    %270 = vmatpush1.msra.mxu0 %v72
    %271 = vmatprep.subr.mxu0 %v77
    %272 = vmatpush1.msra.mxu0 %v76
    %273 = vmatprep.subr.mxu0 %v81
    %274 = vmatpush1.msra.mxu0 %v80
    %275 = vmatprep.subr.mxu0 %v85
    %276 = vmatpush1.msra.mxu0 %v84
    %277 = vmatprep.subr.mxu0 %v89
    %278 = vmatpush1.msra.mxu0 %v88
    %279 = vmatprep.subr.mxu0 %v93
    %280 = vmatpush1.msra.mxu0 %v92
    %281 = vmatprep.subr.mxu0 %v97
    %282 = vmatpush1.msra.mxu0 %v96
    %283 = vmatprep.subr.mxu0 %v101
    %284 = vmatpush1.msra.mxu0 %v100
    %285 = vmatprep.subr.mxu0 %v105
    %286 = vmatpush1.msra.mxu0 %v104
    %287 = vmatprep.subr.mxu0 %v109
    %288 = vmatpush1.msra.mxu0 %v108
    %289 = vmatprep.subr.mxu0 %v113
    %290 = vmatpush1.msra.mxu0 %v112
    %291 = vmatprep.subr.mxu0 %v117
    %292 = vmatpush1.msra.mxu0 %v116
    %293 = vmatprep.subr.mxu0 %v121
    %294 = vmatpush1.msra.mxu0 %v120
    %295 = vmatprep.subr.mxu0 %v125
    %296 = vmatpush1.msra.mxu0 %v124
    %297 = vmatprep.subr.mxu0 %v129
    %298 = vmatpush1.msra.mxu0 %v128
    %299 = vmatprep.subr.mxu0 %v133
    %300 = vmatpush1.msra.mxu0 %v132
    %301 = vmatprep.subr.mxu0 0.0
    %302 = vmatpush1.msra.mxu0 0.0
    %303 = vmatprep.subr.mxu0 0.0
    %304 = vmatpush1.msra.mxu0 0.0
    %305 = vmatprep.subr.mxu0 0.0
    %306 = vmatpush1.msra.mxu0 0.0
    %307 = vmatprep.subr.mxu0 0.0
    %308 = vmatpush1.msra.mxu0 0.0
    %309 = vmatprep.subr.mxu0 0.0
    %310 = vmatpush1.msra.mxu0 0.0
    %311 = vmatprep.subr.mxu0 0.0
    %312 = vmatpush1.msra.mxu0 0.0
    %313 = vmatprep.subr.mxu0 0.0
    %314 = vmatpush1.msra.mxu0 0.0
    %315 = vmatprep.subr.mxu0 0.0
    %316 = vmatpush1.msra.mxu0 0.0
    %317 = vmatprep.subr.mxu0 0.0
    %318 = vmatpush1.msra.mxu0 0.0
    %319 = vmatprep.subr.mxu0 0.0
    %320 = vmatpush1.msra.mxu0 0.0
    %321 = vmatprep.subr.mxu0 0.0
    %322 = vmatpush1.msra.mxu0 0.0
    %323 = vmatprep.subr.mxu0 0.0
    %324 = vmatpush1.msra.mxu0 0.0
    %325 = vmatprep.subr.mxu0 0.0
    %326 = vmatpush1.msra.mxu0 0.0
    %327 = vmatprep.subr.mxu0 0.0
    %328 = vmatpush1.msra.mxu0 0.0
    %329 = vmatprep.subr.mxu0 0.0
    %330 = vmatpush1.msra.mxu0 0.0
    %331 = vmatprep.subr.mxu0 0.0
    %332 = vmatpush1.msra.mxu0 0.0
    %333 = vmatprep.mubr.f32.mxu0 0.0
    %334 = vmatmul.mubr.f32.gmra.mrb[0].mxu0 %v62
    %v335 = vpop.f32.mrb[0].mxu0
    %v336 = vadd.f32 %v147, %v335
    %v337 = vpop.f32.mrb[0].mxu0
    %v338 = vadd.f32 %v151, %v337
    %339 = vmatprep.mubr.f32.mxu0 0.0
    %340 = vmatmul.mubr.f32.gmra.mrb[0].mxu0 %v63
    %v341 = vpop.f32.mrb[0].mxu0
    %v342 = vadd.f32 %v147, %v341
    %v343 = vpop.f32.mrb[0].mxu0
    %v344 = vadd.f32 %v151, %v343
    %345 = vmatprep.mubr.f32.mxu0 0.0
    %346 = vmatmul.mubr.f32.gmra.mrb[0].mxu0 %v64
    %v347 = vpop.f32.mrb[0].mxu0
    %v348 = vadd.f32 %v147, %v347
    %v349 = vpop.f32.mrb[0].mxu0
    %v350 = vadd.f32 %v151, %v349
    %351 = vmatprep.mubr.f32.mxu0 0.0
    %352 = vmatmul.mubr.f32.gmra.mrb[0].mxu0 %v65
    %v353 = vpop.f32.mrb[0].mxu0
    %v354 = vadd.f32 %v147, %v353
    %v355 = vpop.f32.mrb[0].mxu0
    %v356 = vadd.f32 %v151, %v355
    %357 = vmatprep.mubr.f32.mxu0 0.0
    %358 = vmatmul.mubr.f32.gmra.mrb[0].mxu0 %v66
    %v359 = vpop.f32.mrb[0].mxu0
    %v360 = vadd.f32 %v147, %v359
    %v361 = vpop.f32.mrb[0].mxu0
    %v362 = vadd.f32 %v151, %v361
    %363 = vmatprep.mubr.f32.mxu0 0.0
    %364 = vmatmul.mubr.f32.gmra.mrb[0].mxu0 %v67
    %v365 = vpop.f32.mrb[0].mxu0
    %v366 = vadd.f32 %v147, %v365
    %v367 = vpop.f32.mrb[0].mxu0
    %v368 = vadd.f32 %v151, %v367
    %369 = vmatprep.mubr.f32.mxu0 0.0
    %370 = vmatmul.mubr.f32.gmra.mrb[0].mxu0 %v68
    %v371 = vpop.f32.mrb[0].mxu0
    %v372 = vadd.f32 %v147, %v371
    %v373 = vpop.f32.mrb[0].mxu0
    %v374 = vadd.f32 %v151, %v373
    %375 = vmatprep.mubr.f32.mxu0 0.0
    %376 = vmatmul.mubr.f32.gmra.mrb[0].mxu0 %v69
    %v377 = vpop.f32.mrb[0].mxu0
    %v378 = vadd.f32 %v147, %v377
    %v379 = vpop.f32.mrb[0].mxu0
    %v380 = vadd.f32 %v151, %v379
    %381 = vdwg.mxu0
    %382 = vst [vmem:[#allocation2] sm:$0xff] %v223
    %383 = vst [vmem:[#allocation2 + $0x8] sm:$0xff] %v225
    %384 = vst [vmem:[#allocation2 + $0x10] sm:$0xff] %v336
    %385 = vst [vmem:[#allocation2 + $0x18] sm:$0xff] %v338
    %386 = vst [vmem:[#allocation2 + $0x20] sm:$0xff] %v229
    %387 = vst [vmem:[#allocation2 + $0x28] sm:$0xff] %v231
    %388 = vst [vmem:[#allocation2 + $0x30] sm:$0xff] %v342
    %389 = vst [vmem:[#allocation2 + $0x38] sm:$0xff] %v344
    %390 = vst [vmem:[#allocation2 + $0x40] sm:$0xff] %v235
    %391 = vst [vmem:[#allocation2 + $0x48] sm:$0xff] %v237
    %392 = vst [vmem:[#allocation2 + $0x50] sm:$0xff] %v348
    %393 = vst [vmem:[#allocation2 + $0x58] sm:$0xff] %v350
    %394 = vst [vmem:[#allocation2 + $0x60] sm:$0xff] %v241
    %395 = vst [vmem:[#allocation2 + $0x68] sm:$0xff] %v243
    %396 = vst [vmem:[#allocation2 + $0x70] sm:$0xff] %v354
    %397 = vst [vmem:[#allocation2 + $0x78] sm:$0xff] %v356
    %398 = vst [vmem:[#allocation2 + $0x80] sm:$0xff] %v247
    %399 = vst [vmem:[#allocation2 + $0x88] sm:$0xff] %v249
    %400 = vst [vmem:[#allocation2 + $0x90] sm:$0xff] %v360
    %401 = vst [vmem:[#allocation2 + $0x98] sm:$0xff] %v362
    %402 = vst [vmem:[#allocation2 + $0xa0] sm:$0xff] %v253
    %403 = vst [vmem:[#allocation2 + $0xa8] sm:$0xff] %v255
    %404 = vst [vmem:[#allocation2 + $0xb0] sm:$0xff] %v366
    %405 = vst [vmem:[#allocation2 + $0xb8] sm:$0xff] %v368
    %406 = vst [vmem:[#allocation2 + $0xc0] sm:$0xff] %v259
    %407 = vst [vmem:[#allocation2 + $0xc8] sm:$0xff] %v261
    %408 = vst [vmem:[#allocation2 + $0xd0] sm:$0xff] %v372
    %409 = vst [vmem:[#allocation2 + $0xd8] sm:$0xff] %v374
    %410 = vst [vmem:[#allocation2 + $0xe0] sm:$0xff] %v265
    %411 = vst [vmem:[#allocation2 + $0xe8] sm:$0xff] %v267
    %412 = vst [vmem:[#allocation2 + $0xf0] sm:$0xff] %v378
    %413 = vst [vmem:[#allocation2 + $0xf8] sm:$0xff] %v380
    %v414 = vld [vmem:[%s4] sm:$0xff]
    %v415 = vld [vmem:[#allocation2] sm:$0xff]
    %v416 = vld [vmem:[#allocation2 + $0x8] sm:$0xff]
    %v417 = vld [vmem:[#allocation2 + $0x10] sm:$0xff]
    %v418 = vld [vmem:[#allocation2 + $0x18] sm:$0xff]
    %v419 = vld [vmem:[#allocation8] sm:$0xff]
    %v420 = vld [vmem:[#allocation8 + $0x8] sm:$0xff]
    %v421 = vld [vmem:[#allocation8 + $0x10] sm:$0xff]
    %v422 = vld [vmem:[#allocation8 + $0x18] sm:$0xff]
    %v423 = vld [vmem:[#allocation8 + $0x20] sm:$0xff]
    %v424 = vld [vmem:[#allocation8 + $0x28] sm:$0xff]
    %v425 = vld [vmem:[#allocation8 + $0x30] sm:$0xff]
    %v426 = vld [vmem:[#allocation8 + $0x38] sm:$0xff]
    %v427 = vld [vmem:[#allocation8 + $0x40] sm:$0xff]
    %v428 = vld [vmem:[#allocation8 + $0x48] sm:$0xff]
    %v429 = vld [vmem:[#allocation8 + $0x50] sm:$0xff]
    %v430 = vld [vmem:[#allocation8 + $0x58] sm:$0xff]
    %v431 = vld [vmem:[#allocation8 + $0x60] sm:$0xff]
    %v432 = vld [vmem:[#allocation8 + $0x68] sm:$0xff]
    %v433 = vld [vmem:[#allocation8 + $0x70] sm:$0xff]
    %v434 = vld [vmem:[#allocation8 + $0x78] sm:$0xff]
    %v435 = vld [vmem:[#allocation8 + $0x80] sm:$0xff]
    %v436 = vld [vmem:[#allocation8 + $0x88] sm:$0xff]
    %v437 = vld [vmem:[#allocation8 + $0x90] sm:$0xff]
    %v438 = vld [vmem:[#allocation8 + $0x98] sm:$0xff]
    %v439 = vld [vmem:[#allocation8 + $0xa0] sm:$0xff]
    %v440 = vld [vmem:[#allocation8 + $0xa8] sm:$0xff]
    %v441 = vld [vmem:[#allocation8 + $0xb0] sm:$0xff]
    %v442 = vld [vmem:[#allocation8 + $0xb8] sm:$0xff]
    %v443 = vld [vmem:[#allocation8 + $0xc0] sm:$0xff]
    %v444 = vld [vmem:[#allocation8 + $0xc8] sm:$0xff]
    %v445 = vld [vmem:[#allocation8 + $0xd0] sm:$0xff]
    %v446 = vld [vmem:[#allocation8 + $0xd8] sm:$0xff]
    %v447 = vld [vmem:[#allocation8 + $0xe0] sm:$0xff]
    %v448 = vld [vmem:[#allocation8 + $0xe8] sm:$0xff]
    %v449 = vld [vmem:[#allocation8 + $0xf0] sm:$0xff]
    %v450 = vld [vmem:[#allocation8 + $0xf8] sm:$0xff]
    %v451 = vld [vmem:[#allocation8 + $0x100] sm:$0xff]
    %v452 = vld [vmem:[#allocation8 + $0x108] sm:$0xff]
    %v453 = vld [vmem:[#allocation8 + $0x110] sm:$0xff]
    %v454 = vld [vmem:[#allocation8 + $0x118] sm:$0xff]
    %v455 = vld [vmem:[#allocation8 + $0x120] sm:$0xff]
    %v456 = vld [vmem:[#allocation8 + $0x128] sm:$0xff]
    %v457 = vld [vmem:[#allocation8 + $0x130] sm:$0xff]
    %v458 = vld [vmem:[#allocation8 + $0x138] sm:$0xff]
    %v459 = vld [vmem:[#allocation8 + $0x140] sm:$0xff]
    %v460 = vld [vmem:[#allocation8 + $0x148] sm:$0xff]
    %v461 = vld [vmem:[#allocation8 + $0x150] sm:$0xff]
    %v462 = vld [vmem:[#allocation8 + $0x158] sm:$0xff]
    %v463 = vld [vmem:[#allocation8 + $0x160] sm:$0xff]
    %v464 = vld [vmem:[#allocation8 + $0x168] sm:$0xff]
    %v465 = vld [vmem:[#allocation8 + $0x170] sm:$0xff]
    %v466 = vld [vmem:[#allocation8 + $0x178] sm:$0xff]
    %v467 = vld [vmem:[#allocation8 + $0x180] sm:$0xff]
    %v468 = vld [vmem:[#allocation8 + $0x188] sm:$0xff]
    %v469 = vld [vmem:[#allocation8 + $0x190] sm:$0xff]
    %v470 = vld [vmem:[#allocation8 + $0x198] sm:$0xff]
    %v471 = vld [vmem:[#allocation8 + $0x1a0] sm:$0xff]
    %v472 = vld [vmem:[#allocation8 + $0x1a8] sm:$0xff]
    %v473 = vld [vmem:[#allocation8 + $0x1b0] sm:$0xff]
    %v474 = vld [vmem:[#allocation8 + $0x1b8] sm:$0xff]
    %v475 = vld [vmem:[#allocation8 + $0x1c0] sm:$0xff]
    %v476 = vld [vmem:[#allocation8 + $0x1c8] sm:$0xff]
    %v477 = vld [vmem:[#allocation8 + $0x1d0] sm:$0xff]
    %v478 = vld [vmem:[#allocation8 + $0x1d8] sm:$0xff]
    %v479 = vld [vmem:[#allocation8 + $0x1e0] sm:$0xff]
    %v480 = vld [vmem:[#allocation8 + $0x1e8] sm:$0xff]
    %v481 = vld [vmem:[#allocation8 + $0x1f0] sm:$0xff]
    %v482 = vld [vmem:[#allocation8 + $0x1f8] sm:$0xff]
    %483 = vmatprep.subr.mxu0 %v420
    %484 = vmatpush1.msra.mxu0 %v419
    %485 = vmatprep.subr.mxu0 %v424
    %486 = vmatpush1.msra.mxu0 %v423
    %487 = vmatprep.subr.mxu0 %v428
    %488 = vmatpush1.msra.mxu0 %v427
    %489 = vmatprep.subr.mxu0 %v432
    %490 = vmatpush1.msra.mxu0 %v431
    %491 = vmatprep.subr.mxu0 %v436
    %492 = vmatpush1.msra.mxu0 %v435
    %493 = vmatprep.subr.mxu0 %v440
    %494 = vmatpush1.msra.mxu0 %v439
    %495 = vmatprep.subr.mxu0 %v444
    %496 = vmatpush1.msra.mxu0 %v443
    %497 = vmatprep.subr.mxu0 %v448
    %498 = vmatpush1.msra.mxu0 %v447
    %499 = vmatprep.subr.mxu0 %v452
    %500 = vmatpush1.msra.mxu0 %v451
    %501 = vmatprep.subr.mxu0 %v456
    %502 = vmatpush1.msra.mxu0 %v455
    %503 = vmatprep.subr.mxu0 %v460
    %504 = vmatpush1.msra.mxu0 %v459
    %505 = vmatprep.subr.mxu0 %v464
    %506 = vmatpush1.msra.mxu0 %v463
    %507 = vmatprep.subr.mxu0 %v468
    %508 = vmatpush1.msra.mxu0 %v467
    %509 = vmatprep.subr.mxu0 %v472
    %510 = vmatpush1.msra.mxu0 %v471
    %511 = vmatprep.subr.mxu0 %v476
    %512 = vmatpush1.msra.mxu0 %v475
    %513 = vmatprep.subr.mxu0 %v480
    %514 = vmatpush1.msra.mxu0 %v479
    %515 = vmatprep.subr.mxu0 0.0
    %516 = vmatpush1.msra.mxu0 0.0
    %517 = vmatprep.subr.mxu0 0.0
    %518 = vmatpush1.msra.mxu0 0.0
    %519 = vmatprep.subr.mxu0 0.0
    %520 = vmatpush1.msra.mxu0 0.0
    %521 = vmatprep.subr.mxu0 0.0
    %522 = vmatpush1.msra.mxu0 0.0
    %523 = vmatprep.subr.mxu0 0.0
    %524 = vmatpush1.msra.mxu0 0.0
    %525 = vmatprep.subr.mxu0 0.0
    %526 = vmatpush1.msra.mxu0 0.0
    %527 = vmatprep.subr.mxu0 0.0
    %528 = vmatpush1.msra.mxu0 0.0
    %529 = vmatprep.subr.mxu0 0.0
    %530 = vmatpush1.msra.mxu0 0.0
    %531 = vmatprep.subr.mxu0 0.0
    %532 = vmatpush1.msra.mxu0 0.0
    %533 = vmatprep.subr.mxu0 0.0
    %534 = vmatpush1.msra.mxu0 0.0
    %535 = vmatprep.subr.mxu0 0.0
    %536 = vmatpush1.msra.mxu0 0.0
    %537 = vmatprep.subr.mxu0 0.0
    %538 = vmatpush1.msra.mxu0 0.0
    %539 = vmatprep.subr.mxu0 0.0
    %540 = vmatpush1.msra.mxu0 0.0
    %541 = vmatprep.subr.mxu0 0.0
    %542 = vmatpush1.msra.mxu0 0.0
    %543 = vmatprep.subr.mxu0 0.0
    %544 = vmatpush1.msra.mxu0 0.0
    %545 = vmatprep.subr.mxu0 0.0
    %546 = vmatpush1.msra.mxu0 0.0
    %547 = vmatprep.mubr.f32.mxu0 0.0
    %548 = vmatmul.mubr.f32.gmra.mrb[0].mxu0 0.0
    %v549 = vpop.f32.mrb[0].mxu0
    %v550 = vadd.f32 0.0, %v549
    %v551 = vpop.f32.mrb[0].mxu0
    %v552 = vadd.f32 0.0, %v551
    %553 = vdwg.mxu0
    %554 = vmatprep.subr.mxu0 %v422
    %555 = vmatpush1.msra.mxu0 %v421
    %556 = vmatprep.subr.mxu0 %v426
    %557 = vmatpush1.msra.mxu0 %v425
    %558 = vmatprep.subr.mxu0 %v430
    %559 = vmatpush1.msra.mxu0 %v429
    %560 = vmatprep.subr.mxu0 %v434
    %561 = vmatpush1.msra.mxu0 %v433
    %562 = vmatprep.subr.mxu0 %v438
    %563 = vmatpush1.msra.mxu0 %v437
    %564 = vmatprep.subr.mxu0 %v442
    %565 = vmatpush1.msra.mxu0 %v441
    %566 = vmatprep.subr.mxu0 %v446
    %567 = vmatpush1.msra.mxu0 %v445
    %568 = vmatprep.subr.mxu0 %v450
    %569 = vmatpush1.msra.mxu0 %v449
    %570 = vmatprep.subr.mxu0 %v454
    %571 = vmatpush1.msra.mxu0 %v453
    %572 = vmatprep.subr.mxu0 %v458
    %573 = vmatpush1.msra.mxu0 %v457
    %574 = vmatprep.subr.mxu0 %v462
    %575 = vmatpush1.msra.mxu0 %v461
    %576 = vmatprep.subr.mxu0 %v466
    %577 = vmatpush1.msra.mxu0 %v465
    %578 = vmatprep.subr.mxu0 %v470
    %579 = vmatpush1.msra.mxu0 %v469
    %580 = vmatprep.subr.mxu0 %v474
    %581 = vmatpush1.msra.mxu0 %v473
    %582 = vmatprep.subr.mxu0 %v478
    %583 = vmatpush1.msra.mxu0 %v477
    %584 = vmatprep.subr.mxu0 %v482
    %585 = vmatpush1.msra.mxu0 %v481
    %586 = vmatprep.subr.mxu0 0.0
    %587 = vmatpush1.msra.mxu0 0.0
    %588 = vmatprep.subr.mxu0 0.0
    %589 = vmatpush1.msra.mxu0 0.0
    %590 = vmatprep.subr.mxu0 0.0
    %591 = vmatpush1.msra.mxu0 0.0
    %592 = vmatprep.subr.mxu0 0.0
    %593 = vmatpush1.msra.mxu0 0.0
    %594 = vmatprep.subr.mxu0 0.0
    %595 = vmatpush1.msra.mxu0 0.0
    %596 = vmatprep.subr.mxu0 0.0
    %597 = vmatpush1.msra.mxu0 0.0
    %598 = vmatprep.subr.mxu0 0.0
    %599 = vmatpush1.msra.mxu0 0.0
    %600 = vmatprep.subr.mxu0 0.0
    %601 = vmatpush1.msra.mxu0 0.0
    %602 = vmatprep.subr.mxu0 0.0
    %603 = vmatpush1.msra.mxu0 0.0
    %604 = vmatprep.subr.mxu0 0.0
    %605 = vmatpush1.msra.mxu0 0.0
    %606 = vmatprep.subr.mxu0 0.0
    %607 = vmatpush1.msra.mxu0 0.0
    %608 = vmatprep.subr.mxu0 0.0
    %609 = vmatpush1.msra.mxu0 0.0
    %610 = vmatprep.subr.mxu0 0.0
    %611 = vmatpush1.msra.mxu0 0.0
    %612 = vmatprep.subr.mxu0 0.0
    %613 = vmatpush1.msra.mxu0 0.0
    %614 = vmatprep.subr.mxu0 0.0
    %615 = vmatpush1.msra.mxu0 0.0
    %616 = vmatprep.subr.mxu0 0.0
    %617 = vmatpush1.msra.mxu0 0.0
    %618 = vmatprep.mubr.f32.mxu0 0.0
    %619 = vmatmul.mubr.f32.gmra.mrb[0].mxu0 0.0
    %v620 = vpop.f32.mrb[0].mxu0
    %v621 = vadd.f32 0.0, %v620
    %v622 = vpop.f32.mrb[0].mxu0
    %v623 = vadd.f32 0.0, %v622
    %624 = vdwg.mxu0
    %v625 = vadd.f32 %v415, %v550
    %v626 = vadd.f32 %v416, %v552
    %v627 = vadd.f32 %v417, %v621
    %v628 = vadd.f32 %v418, %v623
    %v629 = vxor.u32 %v625, 2147483648
    %v630 = vxor.u32 %v626, 2147483648
    %v631 = vxor.u32 %v627, 2147483648
    %v632 = vmul.f32 %v629, 1.442695
    %v633 = vpow.pop %v632
    %v634 = vmul.f32 %v630, 1.442695
    %v635 = vpow.pop %v634
    %v636 = vmul.f32 %v631, 1.442695
    %v637 = vpow.pop %v636
    %v638 = vadd.f32 %v633, 1.0
    %v639 = vadd.f32 %v635, 1.0
    %v640 = vadd.f32 %v637, 1.0
    %v641 = vrcp.pop %v638
    %v642 = vmul.f32 1.0, %v641
    %v643 = vrcp.pop %v639
    %v644 = vmul.f32 1.0, %v643
    %v645 = vrcp.pop %v640
    %v646 = vmul.f32 1.0, %v645
    %v647 = vtanh.pop %v628
    %v648 = vmul.f32 %v644, 0.0
    %v649 = vmul.f32 %v642, %v647
    %v650 = vadd.f32 %v648, %v649
    %v651 = vtanh.pop %v650
    %v652 = vmul.f32 %v646, %v651
    %vm653 = vcmp.gt.s32.totalorder %v414, 0
    %v654 = vsel %vm653, 1, 0
    %655 = vset.pattern.permute.xlu0 0
    %656 = vperm.xlu0 %655, %v654
    %v657 = vpop.permute.xlu0 %656
    %vm658 = vcmp.eq.s32.totalorder %v657, 1
    %v659 = vsel %vm658, %v652, 0.0
    %v660 = vsel %vm658, %v650, 0.0
    %v661 = vld [vmem:[#allocation2 + $0x20] sm:$0xff]
    %v662 = vld [vmem:[#allocation2 + $0x28] sm:$0xff]
    %v663 = vld [vmem:[#allocation2 + $0x30] sm:$0xff]
    %v664 = vld [vmem:[#allocation2 + $0x38] sm:$0xff]
    %665 = vmatprep.subr.mxu0 %v420
    %666 = vmatpush1.msra.mxu0 %v419
    %667 = vmatprep.subr.mxu0 %v424
    %668 = vmatpush1.msra.mxu0 %v423
    %669 = vmatprep.subr.mxu0 %v428
    %670 = vmatpush1.msra.mxu0 %v427
    %671 = vmatprep.subr.mxu0 %v432
    %672 = vmatpush1.msra.mxu0 %v431
    %673 = vmatprep.subr.mxu0 %v436
    %674 = vmatpush1.msra.mxu0 %v435
    %675 = vmatprep.subr.mxu0 %v440
    %676 = vmatpush1.msra.mxu0 %v439
    %677 = vmatprep.subr.mxu0 %v444
    %678 = vmatpush1.msra.mxu0 %v443
    %679 = vmatprep.subr.mxu0 %v448
    %680 = vmatpush1.msra.mxu0 %v447
    %681 = vmatprep.subr.mxu0 %v452
    %682 = vmatpush1.msra.mxu0 %v451
    %683 = vmatprep.subr.mxu0 %v456
    %684 = vmatpush1.msra.mxu0 %v455
    %685 = vmatprep.subr.mxu0 %v460
    %686 = vmatpush1.msra.mxu0 %v459
    %687 = vmatprep.subr.mxu0 %v464
    %688 = vmatpush1.msra.mxu0 %v463
    %689 = vmatprep.subr.mxu0 %v468
    %690 = vmatpush1.msra.mxu0 %v467
    %691 = vmatprep.subr.mxu0 %v472
    %692 = vmatpush1.msra.mxu0 %v471
    %693 = vmatprep.subr.mxu0 %v476
    %694 = vmatpush1.msra.mxu0 %v475
    %695 = vmatprep.subr.mxu0 %v480
    %696 = vmatpush1.msra.mxu0 %v479
    %697 = vmatprep.subr.mxu0 0.0
    %698 = vmatpush1.msra.mxu0 0.0
    %699 = vmatprep.subr.mxu0 0.0
    %700 = vmatpush1.msra.mxu0 0.0
    %701 = vmatprep.subr.mxu0 0.0
    %702 = vmatpush1.msra.mxu0 0.0
    %703 = vmatprep.subr.mxu0 0.0
    %704 = vmatpush1.msra.mxu0 0.0
    %705 = vmatprep.subr.mxu0 0.0
    %706 = vmatpush1.msra.mxu0 0.0
    %707 = vmatprep.subr.mxu0 0.0
    %708 = vmatpush1.msra.mxu0 0.0
    %709 = vmatprep.subr.mxu0 0.0
    %710 = vmatpush1.msra.mxu0 0.0
    %711 = vmatprep.subr.mxu0 0.0
    %712 = vmatpush1.msra.mxu0 0.0
    %713 = vmatprep.subr.mxu0 0.0
    %714 = vmatpush1.msra.mxu0 0.0
    %715 = vmatprep.subr.mxu0 0.0
    %716 = vmatpush1.msra.mxu0 0.0
    %717 = vmatprep.subr.mxu0 0.0
    %718 = vmatpush1.msra.mxu0 0.0
    %719 = vmatprep.subr.mxu0 0.0
    %720 = vmatpush1.msra.mxu0 0.0
    %721 = vmatprep.subr.mxu0 0.0
    %722 = vmatpush1.msra.mxu0 0.0
    %723 = vmatprep.subr.mxu0 0.0
    %724 = vmatpush1.msra.mxu0 0.0
    %725 = vmatprep.subr.mxu0 0.0
    %726 = vmatpush1.msra.mxu0 0.0
    %727 = vmatprep.subr.mxu0 0.0
    %728 = vmatpush1.msra.mxu0 0.0
    %729 = vmatprep.mubr.f32.mxu0 0.0
    %730 = vmatmul.mubr.f32.gmra.mrb[0].mxu0 %v659
    %v731 = vpop.f32.mrb[0].mxu0
    %v732 = vadd.f32 0.0, %v731
    %v733 = vpop.f32.mrb[0].mxu0
    %v734 = vadd.f32 0.0, %v733
    %735 = vdwg.mxu0
    %736 = vmatprep.subr.mxu0 %v422
    %737 = vmatpush1.msra.mxu0 %v421
    %738 = vmatprep.subr.mxu0 %v426
    %739 = vmatpush1.msra.mxu0 %v425
    %740 = vmatprep.subr.mxu0 %v430
    %741 = vmatpush1.msra.mxu0 %v429
    %742 = vmatprep.subr.mxu0 %v434
    %743 = vmatpush1.msra.mxu0 %v433
    %744 = vmatprep.subr.mxu0 %v438
    %745 = vmatpush1.msra.mxu0 %v437
    %746 = vmatprep.subr.mxu0 %v442
    %747 = vmatpush1.msra.mxu0 %v441
    %748 = vmatprep.subr.mxu0 %v446
    %749 = vmatpush1.msra.mxu0 %v445
    %750 = vmatprep.subr.mxu0 %v450
    %751 = vmatpush1.msra.mxu0 %v449
    %752 = vmatprep.subr.mxu0 %v454
    %753 = vmatpush1.msra.mxu0 %v453
    %754 = vmatprep.subr.mxu0 %v458
    %755 = vmatpush1.msra.mxu0 %v457
    %756 = vmatprep.subr.mxu0 %v462
    %757 = vmatpush1.msra.mxu0 %v461
    %758 = vmatprep.subr.mxu0 %v466
    %759 = vmatpush1.msra.mxu0 %v465
    %760 = vmatprep.subr.mxu0 %v470
    %761 = vmatpush1.msra.mxu0 %v469
    %762 = vmatprep.subr.mxu0 %v474
    %763 = vmatpush1.msra.mxu0 %v473
    %764 = vmatprep.subr.mxu0 %v478
    %765 = vmatpush1.msra.mxu0 %v477
    %766 = vmatprep.subr.mxu0 %v482
    %767 = vmatpush1.msra.mxu0 %v481
    %768 = vmatprep.subr.mxu0 0.0
    %769 = vmatpush1.msra.mxu0 0.0
    %770 = vmatprep.subr.mxu0 0.0
    %771 = vmatpush1.msra.mxu0 0.0
    %772 = vmatprep.subr.mxu0 0.0
    %773 = vmatpush1.msra.mxu0 0.0
    %774 = vmatprep.subr.mxu0 0.0
    %775 = vmatpush1.msra.mxu0 0.0
    %776 = vmatprep.subr.mxu0 0.0
    %777 = vmatpush1.msra.mxu0 0.0
    %778 = vmatprep.subr.mxu0 0.0
    %779 = vmatpush1.msra.mxu0 0.0
    %780 = vmatprep.subr.mxu0 0.0
    %781 = vmatpush1.msra.mxu0 0.0
    %782 = vmatprep.subr.mxu0 0.0
    %783 = vmatpush1.msra.mxu0 0.0
    %784 = vmatprep.subr.mxu0 0.0
    %785 = vmatpush1.msra.mxu0 0.0
    %786 = vmatprep.subr.mxu0 0.0
    %787 = vmatpush1.msra.mxu0 0.0
    %788 = vmatprep.subr.mxu0 0.0
    %789 = vmatpush1.msra.mxu0 0.0
    %790 = vmatprep.subr.mxu0 0.0
    %791 = vmatpush1.msra.mxu0 0.0
    %792 = vmatprep.subr.mxu0 0.0
    %793 = vmatpush1.msra.mxu0 0.0
    %794 = vmatprep.subr.mxu0 0.0
    %795 = vmatpush1.msra.mxu0 0.0
    %796 = vmatprep.subr.mxu0 0.0
    %797 = vmatpush1.msra.mxu0 0.0
    %798 = vmatprep.subr.mxu0 0.0
    %799 = vmatpush1.msra.mxu0 0.0
    %800 = vmatprep.mubr.f32.mxu0 0.0
    %801 = vmatmul.mubr.f32.gmra.mrb[0].mxu0 %v659
    %v802 = vpop.f32.mrb[0].mxu0
    %v803 = vadd.f32 0.0, %v802
    %v804 = vpop.f32.mrb[0].mxu0
    %v805 = vadd.f32 0.0, %v804
    %806 = vdwg.mxu0
    %v807 = vadd.f32 %v661, %v732
    %v808 = vadd.f32 %v662, %v734
    %v809 = vadd.f32 %v663, %v803
    %v810 = vadd.f32 %v664, %v805
    %v811 = vxor.u32 %v807, 2147483648
    %v812 = vxor.u32 %v808, 2147483648
    %v813 = vxor.u32 %v809, 2147483648
    %v814 = vmul.f32 %v811, 1.442695
    %v815 = vpow.pop %v814
    %v816 = vmul.f32 %v812, 1.442695
    %v817 = vpow.pop %v816
    %v818 = vmul.f32 %v813, 1.442695
    %v819 = vpow.pop %v818
    %v820 = vadd.f32 %v815, 1.0
    %v821 = vadd.f32 %v817, 1.0
    %v822 = vadd.f32 %v819, 1.0
    %v823 = vrcp.pop %v820
    %v824 = vmul.f32 1.0, %v823
    %v825 = vrcp.pop %v821
    %v826 = vmul.f32 1.0, %v825
    %v827 = vrcp.pop %v822
    %v828 = vmul.f32 1.0, %v827
    %v829 = vtanh.pop %v810
    %v830 = vmul.f32 %v826, %v660
    %v831 = vmul.f32 %v824, %v829
    %v832 = vadd.f32 %v830, %v831
    %v833 = vtanh.pop %v832
    %v834 = vmul.f32 %v828, %v833
    %vm835 = vcmp.gt.s32.totalorder %v414, 1
    %v836 = vsel %vm835, 1, 0
    %837 = vset.pattern.permute.xlu0 0
    %838 = vperm.xlu0 %837, %v836
    %v839 = vpop.permute.xlu0 %838
    %vm840 = vcmp.eq.s32.totalorder %v839, 1
    %v841 = vsel %vm840, %v834, %v659
    %v842 = vsel %vm840, %v832, %v660
    %v843 = vld [vmem:[#allocation2 + $0x40] sm:$0xff]
    %v844 = vld [vmem:[#allocation2 + $0x48] sm:$0xff]
    %v845 = vld [vmem:[#allocation2 + $0x50] sm:$0xff]
    %v846 = vld [vmem:[#allocation2 + $0x58] sm:$0xff]
    %847 = vmatprep.subr.mxu0 %v420
    %848 = vmatpush1.msra.mxu0 %v419
    %849 = vmatprep.subr.mxu0 %v424
    %850 = vmatpush1.msra.mxu0 %v423
    %851 = vmatprep.subr.mxu0 %v428
    %852 = vmatpush1.msra.mxu0 %v427
    %853 = vmatprep.subr.mxu0 %v432
    %854 = vmatpush1.msra.mxu0 %v431
    %855 = vmatprep.subr.mxu0 %v436
    %856 = vmatpush1.msra.mxu0 %v435
    %857 = vmatprep.subr.mxu0 %v440
    %858 = vmatpush1.msra.mxu0 %v439
    %859 = vmatprep.subr.mxu0 %v444
    %860 = vmatpush1.msra.mxu0 %v443
    %861 = vmatprep.subr.mxu0 %v448
    %862 = vmatpush1.msra.mxu0 %v447
    %863 = vmatprep.subr.mxu0 %v452
    %864 = vmatpush1.msra.mxu0 %v451
    %865 = vmatprep.subr.mxu0 %v456
    %866 = vmatpush1.msra.mxu0 %v455
    %867 = vmatprep.subr.mxu0 %v460
    %868 = vmatpush1.msra.mxu0 %v459
    %869 = vmatprep.subr.mxu0 %v464
    %870 = vmatpush1.msra.mxu0 %v463
    %871 = vmatprep.subr.mxu0 %v468
    %872 = vmatpush1.msra.mxu0 %v467
    %873 = vmatprep.subr.mxu0 %v472
    %874 = vmatpush1.msra.mxu0 %v471
    %875 = vmatprep.subr.mxu0 %v476
    %876 = vmatpush1.msra.mxu0 %v475
    %877 = vmatprep.subr.mxu0 %v480
    %878 = vmatpush1.msra.mxu0 %v479
    %879 = vmatprep.subr.mxu0 0.0
    %880 = vmatpush1.msra.mxu0 0.0
    %881 = vmatprep.subr.mxu0 0.0
    %882 = vmatpush1.msra.mxu0 0.0
    %883 = vmatprep.subr.mxu0 0.0
    %884 = vmatpush1.msra.mxu0 0.0
    %885 = vmatprep.subr.mxu0 0.0
    %886 = vmatpush1.msra.mxu0 0.0
    %887 = vmatprep.subr.mxu0 0.0
    %888 = vmatpush1.msra.mxu0 0.0
    %889 = vmatprep.subr.mxu0 0.0
    %890 = vmatpush1.msra.mxu0 0.0
    %891 = vmatprep.subr.mxu0 0.0
    %892 = vmatpush1.msra.mxu0 0.0
    %893 = vmatprep.subr.mxu0 0.0
    %894 = vmatpush1.msra.mxu0 0.0
    %895 = vmatprep.subr.mxu0 0.0
    %896 = vmatpush1.msra.mxu0 0.0
    %897 = vmatprep.subr.mxu0 0.0
    %898 = vmatpush1.msra.mxu0 0.0
    %899 = vmatprep.subr.mxu0 0.0
    %900 = vmatpush1.msra.mxu0 0.0
    %901 = vmatprep.subr.mxu0 0.0
    %902 = vmatpush1.msra.mxu0 0.0
    %903 = vmatprep.subr.mxu0 0.0
    %904 = vmatpush1.msra.mxu0 0.0
    %905 = vmatprep.subr.mxu0 0.0
    %906 = vmatpush1.msra.mxu0 0.0
    %907 = vmatprep.subr.mxu0 0.0
    %908 = vmatpush1.msra.mxu0 0.0
    %909 = vmatprep.subr.mxu0 0.0
    %910 = vmatpush1.msra.mxu0 0.0
    %911 = vmatprep.mubr.f32.mxu0 0.0
    %912 = vmatmul.mubr.f32.gmra.mrb[0].mxu0 %v841
    %v913 = vpop.f32.mrb[0].mxu0
    %v914 = vadd.f32 0.0, %v913
    %v915 = vpop.f32.mrb[0].mxu0
    %v916 = vadd.f32 0.0, %v915
    %917 = vdwg.mxu0
    %918 = vmatprep.subr.mxu0 %v422
    %919 = vmatpush1.msra.mxu0 %v421
    %920 = vmatprep.subr.mxu0 %v426
    %921 = vmatpush1.msra.mxu0 %v425
    %922 = vmatprep.subr.mxu0 %v430
    %923 = vmatpush1.msra.mxu0 %v429
    %924 = vmatprep.subr.mxu0 %v434
    %925 = vmatpush1.msra.mxu0 %v433
    %926 = vmatprep.subr.mxu0 %v438
    %927 = vmatpush1.msra.mxu0 %v437
    %928 = vmatprep.subr.mxu0 %v442
    %929 = vmatpush1.msra.mxu0 %v441
    %930 = vmatprep.subr.mxu0 %v446
    %931 = vmatpush1.msra.mxu0 %v445
    %932 = vmatprep.subr.mxu0 %v450
    %933 = vmatpush1.msra.mxu0 %v449
    %934 = vmatprep.subr.mxu0 %v454
    %935 = vmatpush1.msra.mxu0 %v453
    %936 = vmatprep.subr.mxu0 %v458
    %937 = vmatpush1.msra.mxu0 %v457
    %938 = vmatprep.subr.mxu0 %v462
    %939 = vmatpush1.msra.mxu0 %v461
    %940 = vmatprep.subr.mxu0 %v466
    %941 = vmatpush1.msra.mxu0 %v465
    %942 = vmatprep.subr.mxu0 %v470
    %943 = vmatpush1.msra.mxu0 %v469
    %944 = vmatprep.subr.mxu0 %v474
    %945 = vmatpush1.msra.mxu0 %v473
    %946 = vmatprep.subr.mxu0 %v478
    %947 = vmatpush1.msra.mxu0 %v477
    %948 = vmatprep.subr.mxu0 %v482
    %949 = vmatpush1.msra.mxu0 %v481
    %950 = vmatprep.subr.mxu0 0.0
    %951 = vmatpush1.msra.mxu0 0.0
    %952 = vmatprep.subr.mxu0 0.0
    %953 = vmatpush1.msra.mxu0 0.0
    %954 = vmatprep.subr.mxu0 0.0
    %955 = vmatpush1.msra.mxu0 0.0
    %956 = vmatprep.subr.mxu0 0.0
    %957 = vmatpush1.msra.mxu0 0.0
    %958 = vmatprep.subr.mxu0 0.0
    %959 = vmatpush1.msra.mxu0 0.0
    %960 = vmatprep.subr.mxu0 0.0
    %961 = vmatpush1.msra.mxu0 0.0
    %962 = vmatprep.subr.mxu0 0.0
    %963 = vmatpush1.msra.mxu0 0.0
    %964 = vmatprep.subr.mxu0 0.0
    %965 = vmatpush1.msra.mxu0 0.0
    %966 = vmatprep.subr.mxu0 0.0
    %967 = vmatpush1.msra.mxu0 0.0
    %968 = vmatprep.subr.mxu0 0.0
    %969 = vmatpush1.msra.mxu0 0.0
    %970 = vmatprep.subr.mxu0 0.0
    %971 = vmatpush1.msra.mxu0 0.0
    %972 = vmatprep.subr.mxu0 0.0
    %973 = vmatpush1.msra.mxu0 0.0
    %974 = vmatprep.subr.mxu0 0.0
    %975 = vmatpush1.msra.mxu0 0.0
    %976 = vmatprep.subr.mxu0 0.0
    %977 = vmatpush1.msra.mxu0 0.0
    %978 = vmatprep.subr.mxu0 0.0
    %979 = vmatpush1.msra.mxu0 0.0
    %980 = vmatprep.subr.mxu0 0.0
    %981 = vmatpush1.msra.mxu0 0.0
    %982 = vmatprep.mubr.f32.mxu0 0.0
    %983 = vmatmul.mubr.f32.gmra.mrb[0].mxu0 %v841
    %v984 = vpop.f32.mrb[0].mxu0
    %v985 = vadd.f32 0.0, %v984
    %v986 = vpop.f32.mrb[0].mxu0
    %v987 = vadd.f32 0.0, %v986
    %988 = vdwg.mxu0
    %v989 = vadd.f32 %v843, %v914
    %v990 = vadd.f32 %v844, %v916
    %v991 = vadd.f32 %v845, %v985
    %v992 = vadd.f32 %v846, %v987
    %v993 = vxor.u32 %v989, 2147483648
    %v994 = vxor.u32 %v990, 2147483648
    %v995 = vxor.u32 %v991, 2147483648
    %v996 = vmul.f32 %v993, 1.442695
    %v997 = vpow.pop %v996
    %v998 = vmul.f32 %v994, 1.442695
    %v999 = vpow.pop %v998
    %v1000 = vmul.f32 %v995, 1.442695
    %v1001 = vpow.pop %v1000
    %v1002 = vadd.f32 %v997, 1.0
    %v1003 = vadd.f32 %v999, 1.0
    %v1004 = vadd.f32 %v1001, 1.0
    %v1005 = vrcp.pop %v1002
    %v1006 = vmul.f32 1.0, %v1005
    %v1007 = vrcp.pop %v1003
    %v1008 = vmul.f32 1.0, %v1007
    %v1009 = vrcp.pop %v1004
    %v1010 = vmul.f32 1.0, %v1009
    %v1011 = vtanh.pop %v992
    %v1012 = vmul.f32 %v1008, %v842
    %v1013 = vmul.f32 %v1006, %v1011
    %v1014 = vadd.f32 %v1012, %v1013
    %v1015 = vtanh.pop %v1014
    %v1016 = vmul.f32 %v1010, %v1015
    %vm1017 = vcmp.gt.s32.totalorder %v414, 2
    %v1018 = vsel %vm1017, 1, 0
    %1019 = vset.pattern.permute.xlu0 0
    %1020 = vperm.xlu0 %1019, %v1018
    %v1021 = vpop.permute.xlu0 %1020
    %vm1022 = vcmp.eq.s32.totalorder %v1021, 1
    %v1023 = vsel %vm1022, %v1016, %v841
    %v1024 = vsel %vm1022, %v1014, %v842
    %v1025 = vld [vmem:[#allocation2 + $0x60] sm:$0xff]
    %v1026 = vld [vmem:[#allocation2 + $0x68] sm:$0xff]
    %v1027 = vld [vmem:[#allocation2 + $0x70] sm:$0xff]
    %v1028 = vld [vmem:[#allocation2 + $0x78] sm:$0xff]
    %1029 = vmatprep.subr.mxu0 %v420
    %1030 = vmatpush1.msra.mxu0 %v419
    %1031 = vmatprep.subr.mxu0 %v424
    %1032 = vmatpush1.msra.mxu0 %v423
    %1033 = vmatprep.subr.mxu0 %v428
    %1034 = vmatpush1.msra.mxu0 %v427
    %1035 = vmatprep.subr.mxu0 %v432
    %1036 = vmatpush1.msra.mxu0 %v431
    %1037 = vmatprep.subr.mxu0 %v436
    %1038 = vmatpush1.msra.mxu0 %v435
    %1039 = vmatprep.subr.mxu0 %v440
    %1040 = vmatpush1.msra.mxu0 %v439
    %1041 = vmatprep.subr.mxu0 %v444
    %1042 = vmatpush1.msra.mxu0 %v443
    %1043 = vmatprep.subr.mxu0 %v448
    %1044 = vmatpush1.msra.mxu0 %v447
    %1045 = vmatprep.subr.mxu0 %v452
    %1046 = vmatpush1.msra.mxu0 %v451
    %1047 = vmatprep.subr.mxu0 %v456
    %1048 = vmatpush1.msra.mxu0 %v455
    %1049 = vmatprep.subr.mxu0 %v460
    %1050 = vmatpush1.msra.mxu0 %v459
    %1051 = vmatprep.subr.mxu0 %v464
    %1052 = vmatpush1.msra.mxu0 %v463
    %1053 = vmatprep.subr.mxu0 %v468
    %1054 = vmatpush1.msra.mxu0 %v467
    %1055 = vmatprep.subr.mxu0 %v472
    %1056 = vmatpush1.msra.mxu0 %v471
    %1057 = vmatprep.subr.mxu0 %v476
    %1058 = vmatpush1.msra.mxu0 %v475
    %1059 = vmatprep.subr.mxu0 %v480
    %1060 = vmatpush1.msra.mxu0 %v479
    %1061 = vmatprep.subr.mxu0 0.0
    %1062 = vmatpush1.msra.mxu0 0.0
    %1063 = vmatprep.subr.mxu0 0.0
    %1064 = vmatpush1.msra.mxu0 0.0
    %1065 = vmatprep.subr.mxu0 0.0
    %1066 = vmatpush1.msra.mxu0 0.0
    %1067 = vmatprep.subr.mxu0 0.0
    %1068 = vmatpush1.msra.mxu0 0.0
    %1069 = vmatprep.subr.mxu0 0.0
    %1070 = vmatpush1.msra.mxu0 0.0
    %1071 = vmatprep.subr.mxu0 0.0
    %1072 = vmatpush1.msra.mxu0 0.0
    %1073 = vmatprep.subr.mxu0 0.0
    %1074 = vmatpush1.msra.mxu0 0.0
    %1075 = vmatprep.subr.mxu0 0.0
    %1076 = vmatpush1.msra.mxu0 0.0
    %1077 = vmatprep.subr.mxu0 0.0
    %1078 = vmatpush1.msra.mxu0 0.0
    %1079 = vmatprep.subr.mxu0 0.0
    %1080 = vmatpush1.msra.mxu0 0.0
    %1081 = vmatprep.subr.mxu0 0.0
    %1082 = vmatpush1.msra.mxu0 0.0
    %1083 = vmatprep.subr.mxu0 0.0
    %1084 = vmatpush1.msra.mxu0 0.0
    %1085 = vmatprep.subr.mxu0 0.0
    %1086 = vmatpush1.msra.mxu0 0.0
    %1087 = vmatprep.subr.mxu0 0.0
    %1088 = vmatpush1.msra.mxu0 0.0
    %1089 = vmatprep.subr.mxu0 0.0
    %1090 = vmatpush1.msra.mxu0 0.0
    %1091 = vmatprep.subr.mxu0 0.0
    %1092 = vmatpush1.msra.mxu0 0.0
    %1093 = vmatprep.mubr.f32.mxu0 0.0
    %1094 = vmatmul.mubr.f32.gmra.mrb[0].mxu0 %v1023
    %v1095 = vpop.f32.mrb[0].mxu0
    %v1096 = vadd.f32 0.0, %v1095
    %v1097 = vpop.f32.mrb[0].mxu0
    %v1098 = vadd.f32 0.0, %v1097
    %1099 = vdwg.mxu0
    %1100 = vmatprep.subr.mxu0 %v422
    %1101 = vmatpush1.msra.mxu0 %v421
    %1102 = vmatprep.subr.mxu0 %v426
    %1103 = vmatpush1.msra.mxu0 %v425
    %1104 = vmatprep.subr.mxu0 %v430
    %1105 = vmatpush1.msra.mxu0 %v429
    %1106 = vmatprep.subr.mxu0 %v434
    %1107 = vmatpush1.msra.mxu0 %v433
    %1108 = vmatprep.subr.mxu0 %v438
    %1109 = vmatpush1.msra.mxu0 %v437
    %1110 = vmatprep.subr.mxu0 %v442
    %1111 = vmatpush1.msra.mxu0 %v441
    %1112 = vmatprep.subr.mxu0 %v446
    %1113 = vmatpush1.msra.mxu0 %v445
    %1114 = vmatprep.subr.mxu0 %v450
    %1115 = vmatpush1.msra.mxu0 %v449
    %1116 = vmatprep.subr.mxu0 %v454
    %1117 = vmatpush1.msra.mxu0 %v453
    %1118 = vmatprep.subr.mxu0 %v458
    %1119 = vmatpush1.msra.mxu0 %v457
    %1120 = vmatprep.subr.mxu0 %v462
    %1121 = vmatpush1.msra.mxu0 %v461
    %1122 = vmatprep.subr.mxu0 %v466
    %1123 = vmatpush1.msra.mxu0 %v465
    %1124 = vmatprep.subr.mxu0 %v470
    %1125 = vmatpush1.msra.mxu0 %v469
    %1126 = vmatprep.subr.mxu0 %v474
    %1127 = vmatpush1.msra.mxu0 %v473
    %1128 = vmatprep.subr.mxu0 %v478
    %1129 = vmatpush1.msra.mxu0 %v477
    %1130 = vmatprep.subr.mxu0 %v482
    %1131 = vmatpush1.msra.mxu0 %v481
    %1132 = vmatprep.subr.mxu0 0.0
    %1133 = vmatpush1.msra.mxu0 0.0
    %1134 = vmatprep.subr.mxu0 0.0
    %1135 = vmatpush1.msra.mxu0 0.0
    %1136 = vmatprep.subr.mxu0 0.0
    %1137 = vmatpush1.msra.mxu0 0.0
    %1138 = vmatprep.subr.mxu0 0.0
    %1139 = vmatpush1.msra.mxu0 0.0
    %1140 = vmatprep.subr.mxu0 0.0
    %1141 = vmatpush1.msra.mxu0 0.0
    %1142 = vmatprep.subr.mxu0 0.0
    %1143 = vmatpush1.msra.mxu0 0.0
    %1144 = vmatprep.subr.mxu0 0.0
    %1145 = vmatpush1.msra.mxu0 0.0
    %1146 = vmatprep.subr.mxu0 0.0
    %1147 = vmatpush1.msra.mxu0 0.0
    %1148 = vmatprep.subr.mxu0 0.0
    %1149 = vmatpush1.msra.mxu0 0.0
    %1150 = vmatprep.subr.mxu0 0.0
    %1151 = vmatpush1.msra.mxu0 0.0
    %1152 = vmatprep.subr.mxu0 0.0
    %1153 = vmatpush1.msra.mxu0 0.0
    %1154 = vmatprep.subr.mxu0 0.0
    %1155 = vmatpush1.msra.mxu0 0.0
    %1156 = vmatprep.subr.mxu0 0.0
    %1157 = vmatpush1.msra.mxu0 0.0
    %1158 = vmatprep.subr.mxu0 0.0
    %1159 = vmatpush1.msra.mxu0 0.0
    %1160 = vmatprep.subr.mxu0 0.0
    %1161 = vmatpush1.msra.mxu0 0.0
    %1162 = vmatprep.subr.mxu0 0.0
    %1163 = vmatpush1.msra.mxu0 0.0
    %1164 = vmatprep.mubr.f32.mxu0 0.0
    %1165 = vmatmul.mubr.f32.gmra.mrb[0].mxu0 %v1023
    %v1166 = vpop.f32.mrb[0].mxu0
    %v1167 = vadd.f32 0.0, %v1166
    %v1168 = vpop.f32.mrb[0].mxu0
    %v1169 = vadd.f32 0.0, %v1168
    %1170 = vdwg.mxu0
    %v1171 = vadd.f32 %v1025, %v1096
    %v1172 = vadd.f32 %v1026, %v1098
    %v1173 = vadd.f32 %v1027, %v1167
    %v1174 = vadd.f32 %v1028, %v1169
    %v1175 = vxor.u32 %v1171, 2147483648
    %v1176 = vxor.u32 %v1172, 2147483648
    %v1177 = vxor.u32 %v1173, 2147483648
    %v1178 = vmul.f32 %v1175, 1.442695
    %v1179 = vpow.pop %v1178
    %v1180 = vmul.f32 %v1176, 1.442695
    %v1181 = vpow.pop %v1180
    %v1182 = vmul.f32 %v1177, 1.442695
    %v1183 = vpow.pop %v1182
    %v1184 = vadd.f32 %v1179, 1.0
    %v1185 = vadd.f32 %v1181, 1.0
    %v1186 = vadd.f32 %v1183, 1.0
    %v1187 = vrcp.pop %v1184
    %v1188 = vmul.f32 1.0, %v1187
    %v1189 = vrcp.pop %v1185
    %v1190 = vmul.f32 1.0, %v1189
    %v1191 = vrcp.pop %v1186
    %v1192 = vmul.f32 1.0, %v1191
    %v1193 = vtanh.pop %v1174
    %v1194 = vmul.f32 %v1190, %v1024
    %v1195 = vmul.f32 %v1188, %v1193
    %v1196 = vadd.f32 %v1194, %v1195
    %v1197 = vtanh.pop %v1196
    %v1198 = vmul.f32 %v1192, %v1197
    %vm1199 = vcmp.gt.s32.totalorder %v414, 3
    %v1200 = vsel %vm1199, 1, 0
    %1201 = vset.pattern.permute.xlu0 0
    %1202 = vperm.xlu0 %1201, %v1200
    %v1203 = vpop.permute.xlu0 %1202
    %vm1204 = vcmp.eq.s32.totalorder %v1203, 1
    %v1205 = vsel %vm1204, %v1198, %v1023
    %v1206 = vsel %vm1204, %v1196, %v1024
    %v1207 = vld [vmem:[#allocation2 + $0x80] sm:$0xff]
    %v1208 = vld [vmem:[#allocation2 + $0x88] sm:$0xff]
    %v1209 = vld [vmem:[#allocation2 + $0x90] sm:$0xff]
    %v1210 = vld [vmem:[#allocation2 + $0x98] sm:$0xff]
    %1211 = vmatprep.subr.mxu0 %v420
    %1212 = vmatpush1.msra.mxu0 %v419
    %1213 = vmatprep.subr.mxu0 %v424
    %1214 = vmatpush1.msra.mxu0 %v423
    %1215 = vmatprep.subr.mxu0 %v428
    %1216 = vmatpush1.msra.mxu0 %v427
    %1217 = vmatprep.subr.mxu0 %v432
    %1218 = vmatpush1.msra.mxu0 %v431
    %1219 = vmatprep.subr.mxu0 %v436
    %1220 = vmatpush1.msra.mxu0 %v435
    %1221 = vmatprep.subr.mxu0 %v440
    %1222 = vmatpush1.msra.mxu0 %v439
    %1223 = vmatprep.subr.mxu0 %v444
    %1224 = vmatpush1.msra.mxu0 %v443
    %1225 = vmatprep.subr.mxu0 %v448
    %1226 = vmatpush1.msra.mxu0 %v447
    %1227 = vmatprep.subr.mxu0 %v452
    %1228 = vmatpush1.msra.mxu0 %v451
    %1229 = vmatprep.subr.mxu0 %v456
    %1230 = vmatpush1.msra.mxu0 %v455
    %1231 = vmatprep.subr.mxu0 %v460
    %1232 = vmatpush1.msra.mxu0 %v459
    %1233 = vmatprep.subr.mxu0 %v464
    %1234 = vmatpush1.msra.mxu0 %v463
    %1235 = vmatprep.subr.mxu0 %v468
    %1236 = vmatpush1.msra.mxu0 %v467
    %1237 = vmatprep.subr.mxu0 %v472
    %1238 = vmatpush1.msra.mxu0 %v471
    %1239 = vmatprep.subr.mxu0 %v476
    %1240 = vmatpush1.msra.mxu0 %v475
    %1241 = vmatprep.subr.mxu0 %v480
    %1242 = vmatpush1.msra.mxu0 %v479
    %1243 = vmatprep.subr.mxu0 0.0
    %1244 = vmatpush1.msra.mxu0 0.0
    %1245 = vmatprep.subr.mxu0 0.0
    %1246 = vmatpush1.msra.mxu0 0.0
    %1247 = vmatprep.subr.mxu0 0.0
    %1248 = vmatpush1.msra.mxu0 0.0
    %1249 = vmatprep.subr.mxu0 0.0
    %1250 = vmatpush1.msra.mxu0 0.0
    %1251 = vmatprep.subr.mxu0 0.0
    %1252 = vmatpush1.msra.mxu0 0.0
    %1253 = vmatprep.subr.mxu0 0.0
    %1254 = vmatpush1.msra.mxu0 0.0
    %1255 = vmatprep.subr.mxu0 0.0
    %1256 = vmatpush1.msra.mxu0 0.0
    %1257 = vmatprep.subr.mxu0 0.0
    %1258 = vmatpush1.msra.mxu0 0.0
    %1259 = vmatprep.subr.mxu0 0.0
    %1260 = vmatpush1.msra.mxu0 0.0
    %1261 = vmatprep.subr.mxu0 0.0
    %1262 = vmatpush1.msra.mxu0 0.0
    %1263 = vmatprep.subr.mxu0 0.0
    %1264 = vmatpush1.msra.mxu0 0.0
    %1265 = vmatprep.subr.mxu0 0.0
    %1266 = vmatpush1.msra.mxu0 0.0
    %1267 = vmatprep.subr.mxu0 0.0
    %1268 = vmatpush1.msra.mxu0 0.0
    %1269 = vmatprep.subr.mxu0 0.0
    %1270 = vmatpush1.msra.mxu0 0.0
    %1271 = vmatprep.subr.mxu0 0.0
    %1272 = vmatpush1.msra.mxu0 0.0
    %1273 = vmatprep.subr.mxu0 0.0
    %1274 = vmatpush1.msra.mxu0 0.0
    %1275 = vmatprep.mubr.f32.mxu0 0.0
    %1276 = vmatmul.mubr.f32.gmra.mrb[0].mxu0 %v1205
    %v1277 = vpop.f32.mrb[0].mxu0
    %v1278 = vadd.f32 0.0, %v1277
    %v1279 = vpop.f32.mrb[0].mxu0
    %v1280 = vadd.f32 0.0, %v1279
    %1281 = vdwg.mxu0
    %1282 = vmatprep.subr.mxu0 %v422
    %1283 = vmatpush1.msra.mxu0 %v421
    %1284 = vmatprep.subr.mxu0 %v426
    %1285 = vmatpush1.msra.mxu0 %v425
    %1286 = vmatprep.subr.mxu0 %v430
    %1287 = vmatpush1.msra.mxu0 %v429
    %1288 = vmatprep.subr.mxu0 %v434
    %1289 = vmatpush1.msra.mxu0 %v433
    %1290 = vmatprep.subr.mxu0 %v438
    %1291 = vmatpush1.msra.mxu0 %v437
    %1292 = vmatprep.subr.mxu0 %v442
    %1293 = vmatpush1.msra.mxu0 %v441
    %1294 = vmatprep.subr.mxu0 %v446
    %1295 = vmatpush1.msra.mxu0 %v445
    %1296 = vmatprep.subr.mxu0 %v450
    %1297 = vmatpush1.msra.mxu0 %v449
    %1298 = vmatprep.subr.mxu0 %v454
    %1299 = vmatpush1.msra.mxu0 %v453
    %1300 = vmatprep.subr.mxu0 %v458
    %1301 = vmatpush1.msra.mxu0 %v457
    %1302 = vmatprep.subr.mxu0 %v462
    %1303 = vmatpush1.msra.mxu0 %v461
    %1304 = vmatprep.subr.mxu0 %v466
    %1305 = vmatpush1.msra.mxu0 %v465
    %1306 = vmatprep.subr.mxu0 %v470
    %1307 = vmatpush1.msra.mxu0 %v469
    %1308 = vmatprep.subr.mxu0 %v474
    %1309 = vmatpush1.msra.mxu0 %v473
    %1310 = vmatprep.subr.mxu0 %v478
    %1311 = vmatpush1.msra.mxu0 %v477
    %1312 = vmatprep.subr.mxu0 %v482
    %1313 = vmatpush1.msra.mxu0 %v481
    %1314 = vmatprep.subr.mxu0 0.0
    %1315 = vmatpush1.msra.mxu0 0.0
    %1316 = vmatprep.subr.mxu0 0.0
    %1317 = vmatpush1.msra.mxu0 0.0
    %1318 = vmatprep.subr.mxu0 0.0
    %1319 = vmatpush1.msra.mxu0 0.0
    %1320 = vmatprep.subr.mxu0 0.0
    %1321 = vmatpush1.msra.mxu0 0.0
    %1322 = vmatprep.subr.mxu0 0.0
    %1323 = vmatpush1.msra.mxu0 0.0
    %1324 = vmatprep.subr.mxu0 0.0
    %1325 = vmatpush1.msra.mxu0 0.0
    %1326 = vmatprep.subr.mxu0 0.0
    %1327 = vmatpush1.msra.mxu0 0.0
    %1328 = vmatprep.subr.mxu0 0.0
    %1329 = vmatpush1.msra.mxu0 0.0
    %1330 = vmatprep.subr.mxu0 0.0
    %1331 = vmatpush1.msra.mxu0 0.0
    %1332 = vmatprep.subr.mxu0 0.0
    %1333 = vmatpush1.msra.mxu0 0.0
    %1334 = vmatprep.subr.mxu0 0.0
    %1335 = vmatpush1.msra.mxu0 0.0
    %1336 = vmatprep.subr.mxu0 0.0
    %1337 = vmatpush1.msra.mxu0 0.0
    %1338 = vmatprep.subr.mxu0 0.0
    %1339 = vmatpush1.msra.mxu0 0.0
    %1340 = vmatprep.subr.mxu0 0.0
    %1341 = vmatpush1.msra.mxu0 0.0
    %1342 = vmatprep.subr.mxu0 0.0
    %1343 = vmatpush1.msra.mxu0 0.0
    %1344 = vmatprep.subr.mxu0 0.0
    %1345 = vmatpush1.msra.mxu0 0.0
    %1346 = vmatprep.mubr.f32.mxu0 0.0
    %1347 = vmatmul.mubr.f32.gmra.mrb[0].mxu0 %v1205
    %v1348 = vpop.f32.mrb[0].mxu0
    %v1349 = vadd.f32 0.0, %v1348
    %v1350 = vpop.f32.mrb[0].mxu0
    %v1351 = vadd.f32 0.0, %v1350
    %1352 = vdwg.mxu0
    %v1353 = vadd.f32 %v1207, %v1278
    %v1354 = vadd.f32 %v1208, %v1280
    %v1355 = vadd.f32 %v1209, %v1349
    %v1356 = vadd.f32 %v1210, %v1351
    %v1357 = vxor.u32 %v1353, 2147483648
    %v1358 = vxor.u32 %v1354, 2147483648
    %v1359 = vxor.u32 %v1355, 2147483648
    %v1360 = vmul.f32 %v1357, 1.442695
    %v1361 = vpow.pop %v1360
    %v1362 = vmul.f32 %v1358, 1.442695
    %v1363 = vpow.pop %v1362
    %v1364 = vmul.f32 %v1359, 1.442695
    %v1365 = vpow.pop %v1364
    %v1366 = vadd.f32 %v1361, 1.0
    %v1367 = vadd.f32 %v1363, 1.0
    %v1368 = vadd.f32 %v1365, 1.0
    %v1369 = vrcp.pop %v1366
    %v1370 = vmul.f32 1.0, %v1369
    %v1371 = vrcp.pop %v1367
    %v1372 = vmul.f32 1.0, %v1371
    %v1373 = vrcp.pop %v1368
    %v1374 = vmul.f32 1.0, %v1373
    %v1375 = vtanh.pop %v1356
    %v1376 = vmul.f32 %v1372, %v1206
    %v1377 = vmul.f32 %v1370, %v1375
    %v1378 = vadd.f32 %v1376, %v1377
    %v1379 = vtanh.pop %v1378
    %v1380 = vmul.f32 %v1374, %v1379
    %vm1381 = vcmp.gt.s32.totalorder %v414, 4
    %v1382 = vsel %vm1381, 1, 0
    %1383 = vset.pattern.permute.xlu0 0
    %1384 = vperm.xlu0 %1383, %v1382
    %v1385 = vpop.permute.xlu0 %1384
    %vm1386 = vcmp.eq.s32.totalorder %v1385, 1
    %v1387 = vsel %vm1386, %v1380, %v1205
    %v1388 = vsel %vm1386, %v1378, %v1206
    %v1389 = vld [vmem:[#allocation2 + $0xa0] sm:$0xff]
    %v1390 = vld [vmem:[#allocation2 + $0xa8] sm:$0xff]
    %v1391 = vld [vmem:[#allocation2 + $0xb0] sm:$0xff]
    %v1392 = vld [vmem:[#allocation2 + $0xb8] sm:$0xff]
    %1393 = vmatprep.subr.mxu0 %v420
    %1394 = vmatpush1.msra.mxu0 %v419
    %1395 = vmatprep.subr.mxu0 %v424
    %1396 = vmatpush1.msra.mxu0 %v423
    %1397 = vmatprep.subr.mxu0 %v428
    %1398 = vmatpush1.msra.mxu0 %v427
    %1399 = vmatprep.subr.mxu0 %v432
    %1400 = vmatpush1.msra.mxu0 %v431
    %1401 = vmatprep.subr.mxu0 %v436
    %1402 = vmatpush1.msra.mxu0 %v435
    %1403 = vmatprep.subr.mxu0 %v440
    %1404 = vmatpush1.msra.mxu0 %v439
    %1405 = vmatprep.subr.mxu0 %v444
    %1406 = vmatpush1.msra.mxu0 %v443
    %1407 = vmatprep.subr.mxu0 %v448
    %1408 = vmatpush1.msra.mxu0 %v447
    %1409 = vmatprep.subr.mxu0 %v452
    %1410 = vmatpush1.msra.mxu0 %v451
    %1411 = vmatprep.subr.mxu0 %v456
    %1412 = vmatpush1.msra.mxu0 %v455
    %1413 = vmatprep.subr.mxu0 %v460
    %1414 = vmatpush1.msra.mxu0 %v459
    %1415 = vmatprep.subr.mxu0 %v464
    %1416 = vmatpush1.msra.mxu0 %v463
    %1417 = vmatprep.subr.mxu0 %v468
    %1418 = vmatpush1.msra.mxu0 %v467
    %1419 = vmatprep.subr.mxu0 %v472
    %1420 = vmatpush1.msra.mxu0 %v471
    %1421 = vmatprep.subr.mxu0 %v476
    %1422 = vmatpush1.msra.mxu0 %v475
    %1423 = vmatprep.subr.mxu0 %v480
    %1424 = vmatpush1.msra.mxu0 %v479
    %1425 = vmatprep.subr.mxu0 0.0
    %1426 = vmatpush1.msra.mxu0 0.0
    %1427 = vmatprep.subr.mxu0 0.0
    %1428 = vmatpush1.msra.mxu0 0.0
    %1429 = vmatprep.subr.mxu0 0.0
    %1430 = vmatpush1.msra.mxu0 0.0
    %1431 = vmatprep.subr.mxu0 0.0
    %1432 = vmatpush1.msra.mxu0 0.0
    %1433 = vmatprep.subr.mxu0 0.0
    %1434 = vmatpush1.msra.mxu0 0.0
    %1435 = vmatprep.subr.mxu0 0.0
    %1436 = vmatpush1.msra.mxu0 0.0
    %1437 = vmatprep.subr.mxu0 0.0
    %1438 = vmatpush1.msra.mxu0 0.0
    %1439 = vmatprep.subr.mxu0 0.0
    %1440 = vmatpush1.msra.mxu0 0.0
    %1441 = vmatprep.subr.mxu0 0.0
    %1442 = vmatpush1.msra.mxu0 0.0
    %1443 = vmatprep.subr.mxu0 0.0
    %1444 = vmatpush1.msra.mxu0 0.0
    %1445 = vmatprep.subr.mxu0 0.0
    %1446 = vmatpush1.msra.mxu0 0.0
    %1447 = vmatprep.subr.mxu0 0.0
    %1448 = vmatpush1.msra.mxu0 0.0
    %1449 = vmatprep.subr.mxu0 0.0
    %1450 = vmatpush1.msra.mxu0 0.0
    %1451 = vmatprep.subr.mxu0 0.0
    %1452 = vmatpush1.msra.mxu0 0.0
    %1453 = vmatprep.subr.mxu0 0.0
    %1454 = vmatpush1.msra.mxu0 0.0
    %1455 = vmatprep.subr.mxu0 0.0
    %1456 = vmatpush1.msra.mxu0 0.0
    %1457 = vmatprep.mubr.f32.mxu0 0.0
    %1458 = vmatmul.mubr.f32.gmra.mrb[0].mxu0 %v1387
    %v1459 = vpop.f32.mrb[0].mxu0
    %v1460 = vadd.f32 0.0, %v1459
    %v1461 = vpop.f32.mrb[0].mxu0
    %v1462 = vadd.f32 0.0, %v1461
    %1463 = vdwg.mxu0
    %1464 = vmatprep.subr.mxu0 %v422
    %1465 = vmatpush1.msra.mxu0 %v421
    %1466 = vmatprep.subr.mxu0 %v426
    %1467 = vmatpush1.msra.mxu0 %v425
    %1468 = vmatprep.subr.mxu0 %v430
    %1469 = vmatpush1.msra.mxu0 %v429
    %1470 = vmatprep.subr.mxu0 %v434
    %1471 = vmatpush1.msra.mxu0 %v433
    %1472 = vmatprep.subr.mxu0 %v438
    %1473 = vmatpush1.msra.mxu0 %v437
    %1474 = vmatprep.subr.mxu0 %v442
    %1475 = vmatpush1.msra.mxu0 %v441
    %1476 = vmatprep.subr.mxu0 %v446
    %1477 = vmatpush1.msra.mxu0 %v445
    %1478 = vmatprep.subr.mxu0 %v450
    %1479 = vmatpush1.msra.mxu0 %v449
    %1480 = vmatprep.subr.mxu0 %v454
    %1481 = vmatpush1.msra.mxu0 %v453
    %1482 = vmatprep.subr.mxu0 %v458
    %1483 = vmatpush1.msra.mxu0 %v457
    %1484 = vmatprep.subr.mxu0 %v462
    %1485 = vmatpush1.msra.mxu0 %v461
    %1486 = vmatprep.subr.mxu0 %v466
    %1487 = vmatpush1.msra.mxu0 %v465
    %1488 = vmatprep.subr.mxu0 %v470
    %1489 = vmatpush1.msra.mxu0 %v469
    %1490 = vmatprep.subr.mxu0 %v474
    %1491 = vmatpush1.msra.mxu0 %v473
    %1492 = vmatprep.subr.mxu0 %v478
    %1493 = vmatpush1.msra.mxu0 %v477
    %1494 = vmatprep.subr.mxu0 %v482
    %1495 = vmatpush1.msra.mxu0 %v481
    %1496 = vmatprep.subr.mxu0 0.0
    %1497 = vmatpush1.msra.mxu0 0.0
    %1498 = vmatprep.subr.mxu0 0.0
    %1499 = vmatpush1.msra.mxu0 0.0
    %1500 = vmatprep.subr.mxu0 0.0
    %1501 = vmatpush1.msra.mxu0 0.0
    %1502 = vmatprep.subr.mxu0 0.0
    %1503 = vmatpush1.msra.mxu0 0.0
    %1504 = vmatprep.subr.mxu0 0.0
    %1505 = vmatpush1.msra.mxu0 0.0
    %1506 = vmatprep.subr.mxu0 0.0
    %1507 = vmatpush1.msra.mxu0 0.0
    %1508 = vmatprep.subr.mxu0 0.0
    %1509 = vmatpush1.msra.mxu0 0.0
    %1510 = vmatprep.subr.mxu0 0.0
    %1511 = vmatpush1.msra.mxu0 0.0
    %1512 = vmatprep.subr.mxu0 0.0
    %1513 = vmatpush1.msra.mxu0 0.0
    %1514 = vmatprep.subr.mxu0 0.0
    %1515 = vmatpush1.msra.mxu0 0.0
    %1516 = vmatprep.subr.mxu0 0.0
    %1517 = vmatpush1.msra.mxu0 0.0
    %1518 = vmatprep.subr.mxu0 0.0
    %1519 = vmatpush1.msra.mxu0 0.0
    %1520 = vmatprep.subr.mxu0 0.0
    %1521 = vmatpush1.msra.mxu0 0.0
    %1522 = vmatprep.subr.mxu0 0.0
    %1523 = vmatpush1.msra.mxu0 0.0
    %1524 = vmatprep.subr.mxu0 0.0
    %1525 = vmatpush1.msra.mxu0 0.0
    %1526 = vmatprep.subr.mxu0 0.0
    %1527 = vmatpush1.msra.mxu0 0.0
    %1528 = vmatprep.mubr.f32.mxu0 0.0
    %1529 = vmatmul.mubr.f32.gmra.mrb[0].mxu0 %v1387
    %v1530 = vpop.f32.mrb[0].mxu0
    %v1531 = vadd.f32 0.0, %v1530
    %v1532 = vpop.f32.mrb[0].mxu0
    %v1533 = vadd.f32 0.0, %v1532
    %1534 = vdwg.mxu0
    %v1535 = vadd.f32 %v1389, %v1460
    %v1536 = vadd.f32 %v1390, %v1462
    %v1537 = vadd.f32 %v1391, %v1531
    %v1538 = vadd.f32 %v1392, %v1533
    %v1539 = vxor.u32 %v1535, 2147483648
    %v1540 = vxor.u32 %v1536, 2147483648
    %v1541 = vxor.u32 %v1537, 2147483648
    %v1542 = vmul.f32 %v1539, 1.442695
    %v1543 = vpow.pop %v1542
    %v1544 = vmul.f32 %v1540, 1.442695
    %v1545 = vpow.pop %v1544
    %v1546 = vmul.f32 %v1541, 1.442695
    %v1547 = vpow.pop %v1546
    %v1548 = vadd.f32 %v1543, 1.0
    %v1549 = vadd.f32 %v1545, 1.0
    %v1550 = vadd.f32 %v1547, 1.0
    %v1551 = vrcp.pop %v1548
    %v1552 = vmul.f32 1.0, %v1551
    %v1553 = vrcp.pop %v1549
    %v1554 = vmul.f32 1.0, %v1553
    %v1555 = vrcp.pop %v1550
    %v1556 = vmul.f32 1.0, %v1555
    %v1557 = vtanh.pop %v1538
    %v1558 = vmul.f32 %v1554, %v1388
    %v1559 = vmul.f32 %v1552, %v1557
    %v1560 = vadd.f32 %v1558, %v1559
    %v1561 = vtanh.pop %v1560
    %v1562 = vmul.f32 %v1556, %v1561
    %vm1563 = vcmp.gt.s32.totalorder %v414, 5
    %v1564 = vsel %vm1563, 1, 0
    %1565 = vset.pattern.permute.xlu0 0
    %1566 = vperm.xlu0 %1565, %v1564
    %v1567 = vpop.permute.xlu0 %1566
    %vm1568 = vcmp.eq.s32.totalorder %v1567, 1
    %v1569 = vsel %vm1568, %v1562, %v1387
    %v1570 = vsel %vm1568, %v1560, %v1388
    %v1571 = vld [vmem:[#allocation2 + $0xc0] sm:$0xff]
    %v1572 = vld [vmem:[#allocation2 + $0xc8] sm:$0xff]
    %v1573 = vld [vmem:[#allocation2 + $0xd0] sm:$0xff]
    %v1574 = vld [vmem:[#allocation2 + $0xd8] sm:$0xff]
    %1575 = vmatprep.subr.mxu0 %v420
    %1576 = vmatpush1.msra.mxu0 %v419
    %1577 = vmatprep.subr.mxu0 %v424
    %1578 = vmatpush1.msra.mxu0 %v423
    %1579 = vmatprep.subr.mxu0 %v428
    %1580 = vmatpush1.msra.mxu0 %v427
    %1581 = vmatprep.subr.mxu0 %v432
    %1582 = vmatpush1.msra.mxu0 %v431
    %1583 = vmatprep.subr.mxu0 %v436
    %1584 = vmatpush1.msra.mxu0 %v435
    %1585 = vmatprep.subr.mxu0 %v440
    %1586 = vmatpush1.msra.mxu0 %v439
    %1587 = vmatprep.subr.mxu0 %v444
    %1588 = vmatpush1.msra.mxu0 %v443
    %1589 = vmatprep.subr.mxu0 %v448
    %1590 = vmatpush1.msra.mxu0 %v447
    %1591 = vmatprep.subr.mxu0 %v452
    %1592 = vmatpush1.msra.mxu0 %v451
    %1593 = vmatprep.subr.mxu0 %v456
    %1594 = vmatpush1.msra.mxu0 %v455
    %1595 = vmatprep.subr.mxu0 %v460
    %1596 = vmatpush1.msra.mxu0 %v459
    %1597 = vmatprep.subr.mxu0 %v464
    %1598 = vmatpush1.msra.mxu0 %v463
    %1599 = vmatprep.subr.mxu0 %v468
    %1600 = vmatpush1.msra.mxu0 %v467
    %1601 = vmatprep.subr.mxu0 %v472
    %1602 = vmatpush1.msra.mxu0 %v471
    %1603 = vmatprep.subr.mxu0 %v476
    %1604 = vmatpush1.msra.mxu0 %v475
    %1605 = vmatprep.subr.mxu0 %v480
    %1606 = vmatpush1.msra.mxu0 %v479
    %1607 = vmatprep.subr.mxu0 0.0
    %1608 = vmatpush1.msra.mxu0 0.0
    %1609 = vmatprep.subr.mxu0 0.0
    %1610 = vmatpush1.msra.mxu0 0.0
    %1611 = vmatprep.subr.mxu0 0.0
    %1612 = vmatpush1.msra.mxu0 0.0
    %1613 = vmatprep.subr.mxu0 0.0
    %1614 = vmatpush1.msra.mxu0 0.0
    %1615 = vmatprep.subr.mxu0 0.0
    %1616 = vmatpush1.msra.mxu0 0.0
    %1617 = vmatprep.subr.mxu0 0.0
    %1618 = vmatpush1.msra.mxu0 0.0
    %1619 = vmatprep.subr.mxu0 0.0
    %1620 = vmatpush1.msra.mxu0 0.0
    %1621 = vmatprep.subr.mxu0 0.0
    %1622 = vmatpush1.msra.mxu0 0.0
    %1623 = vmatprep.subr.mxu0 0.0
    %1624 = vmatpush1.msra.mxu0 0.0
    %1625 = vmatprep.subr.mxu0 0.0
    %1626 = vmatpush1.msra.mxu0 0.0
    %1627 = vmatprep.subr.mxu0 0.0
    %1628 = vmatpush1.msra.mxu0 0.0
    %1629 = vmatprep.subr.mxu0 0.0
    %1630 = vmatpush1.msra.mxu0 0.0
    %1631 = vmatprep.subr.mxu0 0.0
    %1632 = vmatpush1.msra.mxu0 0.0
    %1633 = vmatprep.subr.mxu0 0.0
    %1634 = vmatpush1.msra.mxu0 0.0
    %1635 = vmatprep.subr.mxu0 0.0
    %1636 = vmatpush1.msra.mxu0 0.0
    %1637 = vmatprep.subr.mxu0 0.0
    %1638 = vmatpush1.msra.mxu0 0.0
    %1639 = vmatprep.mubr.f32.mxu0 0.0
    %1640 = vmatmul.mubr.f32.gmra.mrb[0].mxu0 %v1569
    %v1641 = vpop.f32.mrb[0].mxu0
    %v1642 = vadd.f32 0.0, %v1641
    %v1643 = vpop.f32.mrb[0].mxu0
    %v1644 = vadd.f32 0.0, %v1643
    %1645 = vdwg.mxu0
    %1646 = vmatprep.subr.mxu0 %v422
    %1647 = vmatpush1.msra.mxu0 %v421
    %1648 = vmatprep.subr.mxu0 %v426
    %1649 = vmatpush1.msra.mxu0 %v425
    %1650 = vmatprep.subr.mxu0 %v430
    %1651 = vmatpush1.msra.mxu0 %v429
    %1652 = vmatprep.subr.mxu0 %v434
    %1653 = vmatpush1.msra.mxu0 %v433
    %1654 = vmatprep.subr.mxu0 %v438
    %1655 = vmatpush1.msra.mxu0 %v437
    %1656 = vmatprep.subr.mxu0 %v442
    %1657 = vmatpush1.msra.mxu0 %v441
    %1658 = vmatprep.subr.mxu0 %v446
    %1659 = vmatpush1.msra.mxu0 %v445
    %1660 = vmatprep.subr.mxu0 %v450
    %1661 = vmatpush1.msra.mxu0 %v449
    %1662 = vmatprep.subr.mxu0 %v454
    %1663 = vmatpush1.msra.mxu0 %v453
    %1664 = vmatprep.subr.mxu0 %v458
    %1665 = vmatpush1.msra.mxu0 %v457
    %1666 = vmatprep.subr.mxu0 %v462
    %1667 = vmatpush1.msra.mxu0 %v461
    %1668 = vmatprep.subr.mxu0 %v466
    %1669 = vmatpush1.msra.mxu0 %v465
    %1670 = vmatprep.subr.mxu0 %v470
    %1671 = vmatpush1.msra.mxu0 %v469
    %1672 = vmatprep.subr.mxu0 %v474
    %1673 = vmatpush1.msra.mxu0 %v473
    %1674 = vmatprep.subr.mxu0 %v478
    %1675 = vmatpush1.msra.mxu0 %v477
    %1676 = vmatprep.subr.mxu0 %v482
    %1677 = vmatpush1.msra.mxu0 %v481
    %1678 = vmatprep.subr.mxu0 0.0
    %1679 = vmatpush1.msra.mxu0 0.0
    %1680 = vmatprep.subr.mxu0 0.0
    %1681 = vmatpush1.msra.mxu0 0.0
    %1682 = vmatprep.subr.mxu0 0.0
    %1683 = vmatpush1.msra.mxu0 0.0
    %1684 = vmatprep.subr.mxu0 0.0
    %1685 = vmatpush1.msra.mxu0 0.0
    %1686 = vmatprep.subr.mxu0 0.0
    %1687 = vmatpush1.msra.mxu0 0.0
    %1688 = vmatprep.subr.mxu0 0.0
    %1689 = vmatpush1.msra.mxu0 0.0
    %1690 = vmatprep.subr.mxu0 0.0
    %1691 = vmatpush1.msra.mxu0 0.0
    %1692 = vmatprep.subr.mxu0 0.0
    %1693 = vmatpush1.msra.mxu0 0.0
    %1694 = vmatprep.subr.mxu0 0.0
    %1695 = vmatpush1.msra.mxu0 0.0
    %1696 = vmatprep.subr.mxu0 0.0
    %1697 = vmatpush1.msra.mxu0 0.0
    %1698 = vmatprep.subr.mxu0 0.0
    %1699 = vmatpush1.msra.mxu0 0.0
    %1700 = vmatprep.subr.mxu0 0.0
    %1701 = vmatpush1.msra.mxu0 0.0
    %1702 = vmatprep.subr.mxu0 0.0
    %1703 = vmatpush1.msra.mxu0 0.0
    %1704 = vmatprep.subr.mxu0 0.0
    %1705 = vmatpush1.msra.mxu0 0.0
    %1706 = vmatprep.subr.mxu0 0.0
    %1707 = vmatpush1.msra.mxu0 0.0
    %1708 = vmatprep.subr.mxu0 0.0
    %1709 = vmatpush1.msra.mxu0 0.0
    %1710 = vmatprep.mubr.f32.mxu0 0.0
    %1711 = vmatmul.mubr.f32.gmra.mrb[0].mxu0 %v1569
    %v1712 = vpop.f32.mrb[0].mxu0
    %v1713 = vadd.f32 0.0, %v1712
    %v1714 = vpop.f32.mrb[0].mxu0
    %v1715 = vadd.f32 0.0, %v1714
    %1716 = vdwg.mxu0
    %v1717 = vadd.f32 %v1571, %v1642
    %v1718 = vadd.f32 %v1572, %v1644
    %v1719 = vadd.f32 %v1573, %v1713
    %v1720 = vadd.f32 %v1574, %v1715
    %v1721 = vxor.u32 %v1717, 2147483648
    %v1722 = vxor.u32 %v1718, 2147483648
    %v1723 = vxor.u32 %v1719, 2147483648
    %v1724 = vmul.f32 %v1721, 1.442695
    %v1725 = vpow.pop %v1724
    %v1726 = vmul.f32 %v1722, 1.442695
    %v1727 = vpow.pop %v1726
    %v1728 = vmul.f32 %v1723, 1.442695
    %v1729 = vpow.pop %v1728
    %v1730 = vadd.f32 %v1725, 1.0
    %v1731 = vadd.f32 %v1727, 1.0
    %v1732 = vadd.f32 %v1729, 1.0
    %v1733 = vrcp.pop %v1730
    %v1734 = vmul.f32 1.0, %v1733
    %v1735 = vrcp.pop %v1731
    %v1736 = vmul.f32 1.0, %v1735
    %v1737 = vrcp.pop %v1732
    %v1738 = vmul.f32 1.0, %v1737
    %v1739 = vtanh.pop %v1720
    %v1740 = vmul.f32 %v1736, %v1570
    %v1741 = vmul.f32 %v1734, %v1739
    %v1742 = vadd.f32 %v1740, %v1741
    %v1743 = vtanh.pop %v1742
    %v1744 = vmul.f32 %v1738, %v1743
    %vm1745 = vcmp.gt.s32.totalorder %v414, 6
    %v1746 = vsel %vm1745, 1, 0
    %1747 = vset.pattern.permute.xlu0 0
    %1748 = vperm.xlu0 %1747, %v1746
    %v1749 = vpop.permute.xlu0 %1748
    %vm1750 = vcmp.eq.s32.totalorder %v1749, 1
    %v1751 = vsel %vm1750, %v1744, %v1569
    %v1752 = vsel %vm1750, %v1742, %v1570
    %v1753 = vld [vmem:[#allocation2 + $0xe0] sm:$0xff]
    %v1754 = vld [vmem:[#allocation2 + $0xe8] sm:$0xff]
    %v1755 = vld [vmem:[#allocation2 + $0xf0] sm:$0xff]
    %v1756 = vld [vmem:[#allocation2 + $0xf8] sm:$0xff]
    %1757 = vmatprep.subr.mxu0 %v420
    %1758 = vmatpush1.msra.mxu0 %v419
    %1759 = vmatprep.subr.mxu0 %v424
    %1760 = vmatpush1.msra.mxu0 %v423
    %1761 = vmatprep.subr.mxu0 %v428
    %1762 = vmatpush1.msra.mxu0 %v427
    %1763 = vmatprep.subr.mxu0 %v432
    %1764 = vmatpush1.msra.mxu0 %v431
    %1765 = vmatprep.subr.mxu0 %v436
    %1766 = vmatpush1.msra.mxu0 %v435
    %1767 = vmatprep.subr.mxu0 %v440
    %1768 = vmatpush1.msra.mxu0 %v439
    %1769 = vmatprep.subr.mxu0 %v444
    %1770 = vmatpush1.msra.mxu0 %v443
    %1771 = vmatprep.subr.mxu0 %v448
    %1772 = vmatpush1.msra.mxu0 %v447
    %1773 = vmatprep.subr.mxu0 %v452
    %1774 = vmatpush1.msra.mxu0 %v451
    %1775 = vmatprep.subr.mxu0 %v456
    %1776 = vmatpush1.msra.mxu0 %v455
    %1777 = vmatprep.subr.mxu0 %v460
    %1778 = vmatpush1.msra.mxu0 %v459
    %1779 = vmatprep.subr.mxu0 %v464
    %1780 = vmatpush1.msra.mxu0 %v463
    %1781 = vmatprep.subr.mxu0 %v468
    %1782 = vmatpush1.msra.mxu0 %v467
    %1783 = vmatprep.subr.mxu0 %v472
    %1784 = vmatpush1.msra.mxu0 %v471
    %1785 = vmatprep.subr.mxu0 %v476
    %1786 = vmatpush1.msra.mxu0 %v475
    %1787 = vmatprep.subr.mxu0 %v480
    %1788 = vmatpush1.msra.mxu0 %v479
    %1789 = vmatprep.subr.mxu0 0.0
    %1790 = vmatpush1.msra.mxu0 0.0
    %1791 = vmatprep.subr.mxu0 0.0
    %1792 = vmatpush1.msra.mxu0 0.0
    %1793 = vmatprep.subr.mxu0 0.0
    %1794 = vmatpush1.msra.mxu0 0.0
    %1795 = vmatprep.subr.mxu0 0.0
    %1796 = vmatpush1.msra.mxu0 0.0
    %1797 = vmatprep.subr.mxu0 0.0
    %1798 = vmatpush1.msra.mxu0 0.0
    %1799 = vmatprep.subr.mxu0 0.0
    %1800 = vmatpush1.msra.mxu0 0.0
    %1801 = vmatprep.subr.mxu0 0.0
    %1802 = vmatpush1.msra.mxu0 0.0
    %1803 = vmatprep.subr.mxu0 0.0
    %1804 = vmatpush1.msra.mxu0 0.0
    %1805 = vmatprep.subr.mxu0 0.0
    %1806 = vmatpush1.msra.mxu0 0.0
    %1807 = vmatprep.subr.mxu0 0.0
    %1808 = vmatpush1.msra.mxu0 0.0
    %1809 = vmatprep.subr.mxu0 0.0
    %1810 = vmatpush1.msra.mxu0 0.0
    %1811 = vmatprep.subr.mxu0 0.0
    %1812 = vmatpush1.msra.mxu0 0.0
    %1813 = vmatprep.subr.mxu0 0.0
    %1814 = vmatpush1.msra.mxu0 0.0
    %1815 = vmatprep.subr.mxu0 0.0
    %1816 = vmatpush1.msra.mxu0 0.0
    %1817 = vmatprep.subr.mxu0 0.0
    %1818 = vmatpush1.msra.mxu0 0.0
    %1819 = vmatprep.subr.mxu0 0.0
    %1820 = vmatpush1.msra.mxu0 0.0
    %1821 = vmatprep.mubr.f32.mxu0 0.0
    %1822 = vmatmul.mubr.f32.gmra.mrb[0].mxu0 %v1751
    %v1823 = vpop.f32.mrb[0].mxu0
    %v1824 = vadd.f32 0.0, %v1823
    %v1825 = vpop.f32.mrb[0].mxu0
    %v1826 = vadd.f32 0.0, %v1825
    %1827 = vdwg.mxu0
    %1828 = vmatprep.subr.mxu0 %v422
    %1829 = vmatpush1.msra.mxu0 %v421
    %1830 = vmatprep.subr.mxu0 %v426
    %1831 = vmatpush1.msra.mxu0 %v425
    %1832 = vmatprep.subr.mxu0 %v430
    %1833 = vmatpush1.msra.mxu0 %v429
    %1834 = vmatprep.subr.mxu0 %v434
    %1835 = vmatpush1.msra.mxu0 %v433
    %1836 = vmatprep.subr.mxu0 %v438
    %1837 = vmatpush1.msra.mxu0 %v437
    %1838 = vmatprep.subr.mxu0 %v442
    %1839 = vmatpush1.msra.mxu0 %v441
    %1840 = vmatprep.subr.mxu0 %v446
    %1841 = vmatpush1.msra.mxu0 %v445
    %1842 = vmatprep.subr.mxu0 %v450
    %1843 = vmatpush1.msra.mxu0 %v449
    %1844 = vmatprep.subr.mxu0 %v454
    %1845 = vmatpush1.msra.mxu0 %v453
    %1846 = vmatprep.subr.mxu0 %v458
    %1847 = vmatpush1.msra.mxu0 %v457
    %1848 = vmatprep.subr.mxu0 %v462
    %1849 = vmatpush1.msra.mxu0 %v461
    %1850 = vmatprep.subr.mxu0 %v466
    %1851 = vmatpush1.msra.mxu0 %v465
    %1852 = vmatprep.subr.mxu0 %v470
    %1853 = vmatpush1.msra.mxu0 %v469
    %1854 = vmatprep.subr.mxu0 %v474
    %1855 = vmatpush1.msra.mxu0 %v473
    %1856 = vmatprep.subr.mxu0 %v478
    %1857 = vmatpush1.msra.mxu0 %v477
    %1858 = vmatprep.subr.mxu0 %v482
    %1859 = vmatpush1.msra.mxu0 %v481
    %1860 = vmatprep.subr.mxu0 0.0
    %1861 = vmatpush1.msra.mxu0 0.0
    %1862 = vmatprep.subr.mxu0 0.0
    %1863 = vmatpush1.msra.mxu0 0.0
    %1864 = vmatprep.subr.mxu0 0.0
    %1865 = vmatpush1.msra.mxu0 0.0
    %1866 = vmatprep.subr.mxu0 0.0
    %1867 = vmatpush1.msra.mxu0 0.0
    %1868 = vmatprep.subr.mxu0 0.0
    %1869 = vmatpush1.msra.mxu0 0.0
    %1870 = vmatprep.subr.mxu0 0.0
    %1871 = vmatpush1.msra.mxu0 0.0
    %1872 = vmatprep.subr.mxu0 0.0
    %1873 = vmatpush1.msra.mxu0 0.0
    %1874 = vmatprep.subr.mxu0 0.0
    %1875 = vmatpush1.msra.mxu0 0.0
    %1876 = vmatprep.subr.mxu0 0.0
    %1877 = vmatpush1.msra.mxu0 0.0
    %1878 = vmatprep.subr.mxu0 0.0
    %1879 = vmatpush1.msra.mxu0 0.0
    %1880 = vmatprep.subr.mxu0 0.0
    %1881 = vmatpush1.msra.mxu0 0.0
    %1882 = vmatprep.subr.mxu0 0.0
    %1883 = vmatpush1.msra.mxu0 0.0
    %1884 = vmatprep.subr.mxu0 0.0
    %1885 = vmatpush1.msra.mxu0 0.0
    %1886 = vmatprep.subr.mxu0 0.0
    %1887 = vmatpush1.msra.mxu0 0.0
    %1888 = vmatprep.subr.mxu0 0.0
    %1889 = vmatpush1.msra.mxu0 0.0
    %1890 = vmatprep.subr.mxu0 0.0
    %1891 = vmatpush1.msra.mxu0 0.0
    %1892 = vmatprep.mubr.f32.mxu0 0.0
    %1893 = vmatmul.mubr.f32.gmra.mrb[0].mxu0 %v1751
    %v1894 = vpop.f32.mrb[0].mxu0
    %v1895 = vadd.f32 0.0, %v1894
    %v1896 = vpop.f32.mrb[0].mxu0
    %v1897 = vadd.f32 0.0, %v1896
    %1898 = vdwg.mxu0
    %v1899 = vadd.f32 %v1753, %v1824
    %v1900 = vadd.f32 %v1754, %v1826
    %v1901 = vadd.f32 %v1755, %v1895
    %v1902 = vadd.f32 %v1756, %v1897
    %v1903 = vxor.u32 %v1899, 2147483648
    %v1904 = vxor.u32 %v1900, 2147483648
    %v1905 = vxor.u32 %v1901, 2147483648
    %v1906 = vmul.f32 %v1903, 1.442695
    %v1907 = vpow.pop %v1906
    %v1908 = vmul.f32 %v1904, 1.442695
    %v1909 = vpow.pop %v1908
    %v1910 = vmul.f32 %v1905, 1.442695
    %v1911 = vpow.pop %v1910
    %v1912 = vadd.f32 %v1907, 1.0
    %v1913 = vadd.f32 %v1909, 1.0
    %v1914 = vadd.f32 %v1911, 1.0
    %v1915 = vrcp.pop %v1912
    %v1916 = vmul.f32 1.0, %v1915
    %v1917 = vrcp.pop %v1913
    %v1918 = vmul.f32 1.0, %v1917
    %v1919 = vrcp.pop %v1914
    %v1920 = vmul.f32 1.0, %v1919
    %v1921 = vtanh.pop %v1902
    %v1922 = vmul.f32 %v1918, %v1752
    %v1923 = vmul.f32 %v1916, %v1921
    %v1924 = vadd.f32 %v1922, %v1923
    %v1925 = vtanh.pop %v1924
    %v1926 = vmul.f32 %v1920, %v1925
    %vm1927 = vcmp.gt.s32.totalorder %v414, 7
    %v1928 = vsel %vm1927, 1, 0
    %1929 = vset.pattern.permute.xlu0 0
    %1930 = vperm.xlu0 %1929, %v1928
    %v1931 = vpop.permute.xlu0 %1930
    %vm1932 = vcmp.eq.s32.totalorder %v1931, 1
    %v1933 = vsel %vm1932, %v1926, %v1751
    %1934 = vst [vmem:[#allocation9] sm:$0xff] %v1933
    // Predicated region
    $region34: #{tpu_custom_call.1} parent=1 // pred_check
      _
    $region35: #{tpu_custom_call.1} parent=1 // pred_check_branch
      %1936 = sbr.rel (0) target = $region37
    $region36: #{tpu_custom_call.1} parent=1 // pred_region
      %s1938 = ssub.s32 128, 128
      %1939 = vsyncadd [#allocation5], %s1938
      %s1941 = sshll.u32 [#allocation9], 4
      %s1942 = int_to_ptr.vmem [resolvable:$true] %s1941
      %1944 = dma.vmem_to_hbm [thread:$0]  %s1942, 128, %s5, [#allocation5]
    $region37: #{tpu_custom_call.1} parent=1 // pred_fallthru
      _
    // Predicated region
    $region38: #{tpu_custom_call.1} parent=1 // pred_check
      _
    $region39: #{tpu_custom_call.1} parent=1 // pred_check_branch
      %1946 = sbr.rel (0) target = $region41
    $region40: #{tpu_custom_call.1} parent=1 // pred_region
      %1947 = dma.done [#allocation5], 128
    $region41: #{tpu_custom_call.1} parent=1 // pred_fallthru
      _
    %1948 = vsyncpa [#allocation4], 1
    %1949 = vsyncpa [#allocation7], 1
    %1950 = vsyncpa [#allocation5], 1

</llo_original>
